<compile_context>
chip_gen: v6e
topology: v6e:2x2x1
jax: 0.10.0
libtpu: 0.0.40
codegen_flags: <defaults>
</compile_context>

<pallas_src>
import functools

import jax
import jax.numpy as jnp
from jax.experimental import pallas as pl
from jax.experimental.pallas import tpu as pltpu


# ----------------------------------------------------------------------------
# Small helpers
# ----------------------------------------------------------------------------
def _round_up(x, m):
    return ((x + m - 1) // m) * m


def _pick_tile(dim, requested, align):
    """Pick a tile (multiple of `align`, <= requested) and padded extent with
    minimal padding (< n_tiles * align extra)."""
    dim_a = _round_up(max(int(dim), 1), align)
    req = _round_up(min(int(requested), dim_a), align)
    n_tiles = -(-dim_a // req)
    tile = _round_up(-(-dim_a // n_tiles), align)
    return tile, n_tiles * tile


def _pad2d(x, rows, cols):
    r, c = x.shape
    if r == rows and c == cols:
        return x
    return jnp.pad(x, ((0, rows - r), (0, cols - c)))


def _vmem_limit_bytes():
    cap = 64 * 1024 * 1024
    try:
        info = pltpu.get_tpu_info()
        cap = int(getattr(info, "vmem_capacity_bytes", cap) or cap)
    except Exception:
        pass
    # Leave headroom for Mosaic internal scratch: 128 MiB parts (v5e/v6e) get
    # ~112 MiB, 64 MiB parts (v7x) get ~56 MiB.
    return int(min(cap - 8 * 1024 * 1024, 112 * 1024 * 1024))


# ----------------------------------------------------------------------------
# Pallas kernel: one tiled propagation matmul  out = adj @ x
# ----------------------------------------------------------------------------
def _propagate_kernel(adj_ref, x_ref, out_ref, *, tk, x_resident):
    """One grid step of out = adj @ x for one (row-tile, K-tile).

    adj_ref: [TM, TK] bf16 streamed block of the (padded) adjacency quadrant.
    x_ref:   [K, D]  bf16 VMEM-resident embeddings (grid-invariant block), or
             [TK, D] bf16 streamed block when x is too large to keep resident.
    out_ref: [TM, D] f32 revisited output block (resident across the K axis).
    """
    k = pl.program_id(1)

    if x_resident:
        col0 = pl.multiple_of(k * tk, tk)
        x_tile = x_ref[pl.ds(col0, tk), :]
    else:
        x_tile = x_ref[...]

    partial = jnp.dot(adj_ref[...], x_tile, preferred_element_type=jnp.float32)

    @pl.when(k == 0)
    def _():
        # First K block: plain assign (no zero-fill + read-modify-write pass).
        out_ref[...] = partial

    @pl.when(k > 0)
    def _():
        out_ref[...] += partial


def _propagate(adj_pad, x_pad, tm, tk, vmem_limit):
    """out[M_pad, D_pad] = adj_pad[M_pad, K_pad] @ x_pad[K_pad, D_pad] (f32)."""
    m_pad, k_pad = adj_pad.shape
    kx, d_pad = x_pad.shape
    if kx != k_pad or m_pad % tm or k_pad % tk:
        raise ValueError(
            f"bad tiling: adj={adj_pad.shape} x={x_pad.shape} tm={tm} tk={tk}")
    grid = (m_pad // tm, k_pad // tk)

    # Keep the small [K, D] embeddings VMEM-resident (their block index is
    # grid-invariant, so they are DMA'd once) whenever they fit comfortably;
    # otherwise stream (tk, D) blocks, re-read once per row tile.
    # TODO(synk): pipeline_mode=pl.Buffered(1) on the resident spec would avoid
    # double-buffering the invariant input and free ~K*D*2 bytes of VMEM.
    x_res_bytes = 2 * k_pad * d_pad * 2                  # bf16, double-buffered
    working = 2 * tm * tk * 2 + 2 * tm * d_pad * 4       # adj blocks + out blocks
    x_resident = (x_res_bytes + working) <= int(0.7 * vmem_limit)

    if x_resident:
        x_spec = pl.BlockSpec((k_pad, d_pad), lambda i, k: (0, 0))
        x_bytes = k_pad * d_pad * 2
    else:
        x_spec = pl.BlockSpec((tk, d_pad), lambda i, k: (k, 0))
        x_bytes = grid[0] * k_pad * d_pad * 2

    cost = pl.CostEstimate(
        flops=int(2 * m_pad * k_pad * d_pad),
        transcendentals=0,
        bytes_accessed=int(m_pad * k_pad * 2 + x_bytes + m_pad * d_pad * 4),
    )

    return pl.pallas_call(
        functools.partial(_propagate_kernel, tk=tk, x_resident=x_resident),
        out_shape=jax.ShapeDtypeStruct((m_pad, d_pad), jnp.float32),
        grid_spec=pltpu.PrefetchScalarGridSpec(
            num_scalar_prefetch=0,
            grid=grid,
            in_specs=[
                pl.BlockSpec((tm, tk), lambda i, k: (i, k)),   # adjacency stream
                x_spec,                                        # embeddings
            ],
            out_specs=pl.BlockSpec((tm, d_pad), lambda i, k: (i, 0)),
        ),
        compiler_params=pltpu.CompilerParams(
            # Row axis is independent -> megacore-shardable on v7x.
            dimension_semantics=("parallel", "arbitrary"),
            vmem_limit_bytes=vmem_limit,
        ),
        cost_estimate=cost,
    )(adj_pad, x_pad)


# ----------------------------------------------------------------------------
# One-time adjacency preparation (hoisted out of the per-forward hot path)
# ----------------------------------------------------------------------------
def prepare_adjacency(norm_adj, num_users, num_items, *, bipartite=True, block=1024):
    """Quadrant extraction + bf16 cast + tile-aligned zero padding, done ONCE.

    bipartite=True assumes the user-user and item-item quadrants of norm_adj
    are structurally zero (standard SGL / LightGCN normalized adjacency).
    """
    n = num_users + num_items
    if norm_adj.shape != (n, n):
        raise ValueError(f"norm_adj shape {norm_adj.shape} != ({n}, {n})")

    if bipartite:
        tile_u, u_pad = _pick_tile(num_users, block, 128)
        tile_i, i_pad = _pick_tile(num_items, block, 128)
        r = norm_adj[:num_users, num_users:].astype(jnp.bfloat16)
        rt = norm_adj[num_users:, :num_users].astype(jnp.bfloat16)
        return dict(
            bipartite=True, num_users=num_users, num_items=num_items,
            tile_u=tile_u, tile_i=tile_i, u_pad=u_pad, i_pad=i_pad,
            R=_pad2d(r, u_pad, i_pad), Rt=_pad2d(rt, i_pad, u_pad))

    tile_n, n_pad = _pick_tile(n, block, 128)
    a = norm_adj.astype(jnp.bfloat16)
    return dict(
        bipartite=False, num_users=num_users, num_items=num_items,
        tile_n=tile_n, n_pad=n_pad, A=_pad2d(a, n_pad, n_pad))


# ----------------------------------------------------------------------------
# Forward pass (SGL_Encoder.forward, perturbed_adj=None path)
# ----------------------------------------------------------------------------
def sgl_encoder_forward_prepared(prep, user_emb, item_emb, n_layers=3):
    """Replicates SGL_Encoder.forward() given a prepared adjacency.

    Returns (user_all_embeddings [U, D], item_all_embeddings [I, D]) in f32.
    TODO(synk): perturbed_adj (single matrix or per-layer list) is supported by
    passing a different prepared adjacency per layer; not exercised here.
    """
    num_users, d = user_emb.shape
    num_items = item_emb.shape[0]
    if n_layers == 0:
        return user_emb, item_emb

    d_pad = _round_up(d, 128)
    inv = 1.0 / float(n_layers + 1)
    vmem_limit = _vmem_limit_bytes()

    if prep["bipartite"]:
        u = _pad2d(user_emb.astype(jnp.float32), prep["u_pad"], d_pad)
        it = _pad2d(item_emb.astype(jnp.float32), prep["i_pad"], d_pad)
        acc_u, acc_it = u, it
        for _ in range(n_layers):
            u_b = u.astype(jnp.bfloat16)      # matmul-input quantization only;
            it_b = it.astype(jnp.bfloat16)    # carried state stays f32
            u_new = _propagate(prep["R"], it_b, prep["tile_u"], prep["tile_i"],
                               vmem_limit)
            it_new = _propagate(prep["Rt"], u_b, prep["tile_i"], prep["tile_u"],
                                vmem_limit)
            u, it = u_new, it_new
            acc_u = acc_u + u
            acc_it = acc_it + it
        return acc_u[:num_users, :d] * inv, acc_it[:num_items, :d] * inv

    # Dense fallback: stream the full (padded) adjacency each layer.
    n_pad, tile_n = prep["n_pad"], prep["tile_n"]
    ego = jnp.concatenate([user_emb, item_emb], axis=0).astype(jnp.float32)
    ego = _pad2d(ego, n_pad, d_pad)
    acc = ego
    for _ in range(n_layers):
        ego = _propagate(prep["A"], ego.astype(jnp.bfloat16), tile_n, tile_n,
                         vmem_limit)
        acc = acc + ego
    mean = acc * inv
    return (mean[:num_users, :d],
            mean[num_users:num_users + num_items, :d])


def sgl_encoder_forward(norm_adj, user_emb, item_emb, n_layers=3, *,
                        bipartite=True, block=1024):
    """Convenience wrapper matching the module API (prep done per call).

    For repeated forwards (training), call prepare_adjacency() once and use
    sgl_encoder_forward_prepared() to keep the bf16 cast / padding off the hot
    path.
    """
    prep = prepare_adjacency(norm_adj, user_emb.shape[0], item_emb.shape[0],
                             bipartite=bipartite, block=block)
    return sgl_encoder_forward_prepared(prep, user_emb, item_emb, n_layers)


# ----------------------------------------------------------------------------
# Pure-JAX reference + deterministic test data
# ----------------------------------------------------------------------------
def _reference_forward(norm_adj, user_emb, item_emb, n_layers=3):
    """f32 reference matching the PyTorch forward semantics."""
    ego = jnp.concatenate([user_emb, item_emb], axis=0)
    all_embeddings = [ego]
    for _ in range(n_layers):
        ego = norm_adj @ ego
        all_embeddings.append(ego)
    stacked = jnp.stack(all_embeddings, axis=1)
    mean_emb = jnp.mean(stacked, axis=1)
    num_users = user_emb.shape[0]
    return mean_emb[:num_users], mean_emb[num_users:]


def _make_norm_adj(key, num_users, num_items):
    """Deterministic symmetric-normalized bipartite adjacency (LightGCN style)."""
    n = num_users + num_items
    r = (jax.random.uniform(key, (num_users, num_items)) < 0.05).astype(jnp.float32)
    adj = jnp.zeros((n, n), jnp.float32)
    adj = adj.at[:num_users, num_users:].set(r)
    adj = adj.at[num_users:, :num_users].set(r.T)
    deg = jnp.sum(adj, axis=1)
    d_inv_sqrt = jnp.where(deg > 0, 1.0 / jnp.sqrt(jnp.maximum(deg, 1e-12)), 0.0)
    return adj * d_inv_sqrt[:, None] * d_inv_sqrt[None, :]


if __name__ == "__main__":
    # Small but non-trivial: user/item counts that are NOT tile multiples, so
    # the padding paths are exercised; D = 128 (lane-dense output).
    num_users, num_items, emb_size, n_layers = 320, 192, 128, 3

    key = jax.random.PRNGKey(0)
    k_adj, k_user, k_item = jax.random.split(key, 3)

    norm_adj = _make_norm_adj(k_adj, num_users, num_items)
    user_emb = 0.01 * jax.random.normal(k_user, (num_users, emb_size), jnp.float32)
    item_emb = 0.01 * jax.random.normal(k_item, (num_items, emb_size), jnp.float32)

    # One-time prep (quadrant slicing + bf16 cast + padding) hoisted out of the
    # per-forward hot path.
    prep = prepare_adjacency(norm_adj, num_users, num_items, bipartite=True)
    fwd = jax.jit(lambda u, i: sgl_encoder_forward_prepared(prep, u, i, n_layers))

    user_out, item_out = fwd(user_emb, item_emb)
    jax.block_until_ready((user_out, item_out))

    ref_user, ref_item = _reference_forward(norm_adj, user_emb, item_emb, n_layers)
    assert user_out.shape == (num_users, emb_size)
    assert item_out.shape == (num_items, emb_size)
    # bf16 adjacency / matmul inputs (f32 accumulation) -> slightly loose tol.
    assert jnp.allclose(user_out, ref_user, atol=1e-3, rtol=1e-2), \
        float(jnp.max(jnp.abs(user_out - ref_user)))
    assert jnp.allclose(item_out, ref_item, atol=1e-3, rtol=1e-2), \
        float(jnp.max(jnp.abs(item_out - ref_item)))

    # Also exercise the dense (non-bipartite) fallback path.
    user_d, item_d = sgl_encoder_forward(norm_adj, user_emb, item_emb, n_layers,
                                         bipartite=False)
    jax.block_until_ready((user_d, item_d))
    assert jnp.allclose(user_d, ref_user, atol=1e-3, rtol=1e-2), \
        float(jnp.max(jnp.abs(user_d - ref_user)))
    assert jnp.allclose(item_d, ref_item, atol=1e-3, rtol=1e-2), \
        float(jnp.max(jnp.abs(item_d - ref_item)))

    print("KERNEL_OK")
</pallas_src>

<mosaic_0001>
module attributes {stable_mosaic.version = 11 : i64} {
  func.func @_propagate_kernel(%arg0: i32, %arg1: i32, %arg2: memref<256x384xbf16, #tpu.memory_space<vmem>>, %arg3: memref<384x128xbf16, #tpu.memory_space<vmem>>, %arg4: memref<256x128xf32, #tpu.memory_space<vmem>>) attributes {dimension_semantics = [#tpu.dimension_semantics<parallel>, #tpu.dimension_semantics<arbitrary>], iteration_bounds = array<i64: 1, 1>, scalar_prefetch = 0 : i64, scratch_operands = 0 : i64, tpu.core_type = #tpu.core_type<tc>, window_params = [{transform_indices = @transform_0, window_bounds = array<i64: 256, 384>}, {pipeline_mode = #tpu.pipeline_mode<synchronous>, transform_indices = @transform_1, window_bounds = array<i64: 384, 128>}, {transform_indices = @transform_2, window_bounds = array<i64: 256, 128>}]} {
    %c384_i32 = arith.constant 384 : i32
    %0 = arith.muli %arg1, %c384_i32 : i32
    %1 = tpu.assume_multiple %0, 384 : i32
    %2 = arith.index_cast %1 : i32 to index
    %c0 = arith.constant 0 : index
    %3 = vector.load %arg3[%2, %c0] : memref<384x128xbf16, #tpu.memory_space<vmem>>, vector<384x128xbf16>
    %c0_0 = arith.constant 0 : index
    %c0_1 = arith.constant 0 : index
    %4 = vector.load %arg2[%c0_0, %c0_1] : memref<256x384xbf16, #tpu.memory_space<vmem>>, vector<256x384xbf16>
    %cst = arith.constant dense<0.000000e+00> : vector<256x128xf32>
    %5 = tpu.matmul %4, %3, %cst {dimension_numbers = #tpu.dot_dimension_numbers<[1], [0], [0], [1], [0, 0, 1, 1], [], []>} : vector<256x384xbf16>, vector<384x128xbf16>, vector<256x128xf32> -> vector<256x128xf32>
    %c0_i32 = arith.constant 0 : i32
    %6 = arith.cmpi eq, %arg1, %c0_i32 : i32
    %7 = arith.extui %6 : i1 to i32
    %c0_i32_2 = arith.constant 0 : i32
    %8 = arith.cmpi ne, %7, %c0_i32_2 : i32
    scf.if %8 {
      %c0_5 = arith.constant 0 : index
      %c0_6 = arith.constant 0 : index
      %12 = vector.load %arg4[%c0_5, %c0_6] : memref<256x128xf32, #tpu.memory_space<vmem>>, vector<256x128xf32>
      tpu.vector_store %arg4[%c0_5, %c0_6], %5 {strides = array<i32>} : memref<256x128xf32, #tpu.memory_space<vmem>>, vector<256x128xf32>,
    } else {
    }
    %c0_i32_3 = arith.constant 0 : i32
    %9 = arith.cmpi sgt, %arg1, %c0_i32_3 : i32
    %10 = arith.extui %9 : i1 to i32
    %c0_i32_4 = arith.constant 0 : i32
    %11 = arith.cmpi ne, %10, %c0_i32_4 : i32
    scf.if %11 {
      %c0_5 = arith.constant 0 : index
      %c0_6 = arith.constant 0 : index
      %12 = vector.load %arg4[%c0_5, %c0_6] : memref<256x128xf32, #tpu.memory_space<vmem>>, vector<256x128xf32>
      %13 = arith.addf %12, %5 : vector<256x128xf32>
      %c0_7 = arith.constant 0 : index
      %c0_8 = arith.constant 0 : index
      %14 = vector.load %arg4[%c0_7, %c0_8] : memref<256x128xf32, #tpu.memory_space<vmem>>, vector<256x128xf32>
      tpu.vector_store %arg4[%c0_7, %c0_8], %13 {strides = array<i32>} : memref<256x128xf32, #tpu.memory_space<vmem>>, vector<256x128xf32>,
    } else {
    }
    return
  }
  func.func @transform_0(%arg0: i32, %arg1: i32) -> (i32, i32) {
    %c0_i32 = arith.constant 0 : i32
    return %arg0, %arg1 : i32, i32
  }
  func.func @transform_1(%arg0: i32, %arg1: i32) -> (i32, i32) {
    %c0_i32 = arith.constant 0 : i32
    %c0_i32_0 = arith.constant 0 : i32
    %c0_i32_1 = arith.constant 0 : i32
    return %c0_i32, %c0_i32_0 : i32, i32
  }
  func.func @transform_2(%arg0: i32, %arg1: i32) -> (i32, i32) {
    %c0_i32 = arith.constant 0 : i32
    %c0_i32_0 = arith.constant 0 : i32
    return %arg0, %c0_i32 : i32, i32
  }
}

module attributes {stable_mosaic.version = 11 : i64} {
  func.func @_propagate_kernel(%arg0: i32, %arg1: i32, %arg2: memref<384x256xbf16, #tpu.memory_space<vmem>>, %arg3: memref<256x128xbf16, #tpu.memory_space<vmem>>, %arg4: memref<384x128xf32, #tpu.memory_space<vmem>>) attributes {dimension_semantics = [#tpu.dimension_semantics<parallel>, #tpu.dimension_semantics<arbitrary>], iteration_bounds = array<i64: 1, 1>, scalar_prefetch = 0 : i64, scratch_operands = 0 : i64, tpu.core_type = #tpu.core_type<tc>, window_params = [{transform_indices = @transform_0, window_bounds = array<i64: 384, 256>}, {pipeline_mode = #tpu.pipeline_mode<synchronous>, transform_indices = @transform_1, window_bounds = array<i64: 256, 128>}, {transform_indices = @transform_2, window_bounds = array<i64: 384, 128>}]} {
    %c256_i32 = arith.constant 256 : i32
    %0 = arith.muli %arg1, %c256_i32 : i32
    %1 = tpu.assume_multiple %0, 256 : i32
    %2 = arith.index_cast %1 : i32 to index
    %c0 = arith.constant 0 : index
    %3 = vector.load %arg3[%2, %c0] : memref<256x128xbf16, #tpu.memory_space<vmem>>, vector<256x128xbf16>
    %c0_0 = arith.constant 0 : index
    %c0_1 = arith.constant 0 : index
    %4 = vector.load %arg2[%c0_0, %c0_1] : memref<384x256xbf16, #tpu.memory_space<vmem>>, vector<384x256xbf16>
    %cst = arith.constant dense<0.000000e+00> : vector<384x128xf32>
    %5 = tpu.matmul %4, %3, %cst {dimension_numbers = #tpu.dot_dimension_numbers<[1], [0], [0], [1], [0, 0, 1, 1], [], []>} : vector<384x256xbf16>, vector<256x128xbf16>, vector<384x128xf32> -> vector<384x128xf32>
    %c0_i32 = arith.constant 0 : i32
    %6 = arith.cmpi eq, %arg1, %c0_i32 : i32
    %7 = arith.extui %6 : i1 to i32
    %c0_i32_2 = arith.constant 0 : i32
    %8 = arith.cmpi ne, %7, %c0_i32_2 : i32
    scf.if %8 {
      %c0_5 = arith.constant 0 : index
      %c0_6 = arith.constant 0 : index
      %12 = vector.load %arg4[%c0_5, %c0_6] : memref<384x128xf32, #tpu.memory_space<vmem>>, vector<384x128xf32>
      tpu.vector_store %arg4[%c0_5, %c0_6], %5 {strides = array<i32>} : memref<384x128xf32, #tpu.memory_space<vmem>>, vector<384x128xf32>,
    } else {
    }
    %c0_i32_3 = arith.constant 0 : i32
    %9 = arith.cmpi sgt, %arg1, %c0_i32_3 : i32
    %10 = arith.extui %9 : i1 to i32
    %c0_i32_4 = arith.constant 0 : i32
    %11 = arith.cmpi ne, %10, %c0_i32_4 : i32
    scf.if %11 {
      %c0_5 = arith.constant 0 : index
      %c0_6 = arith.constant 0 : index
      %12 = vector.load %arg4[%c0_5, %c0_6] : memref<384x128xf32, #tpu.memory_space<vmem>>, vector<384x128xf32>
      %13 = arith.addf %12, %5 : vector<384x128xf32>
      %c0_7 = arith.constant 0 : index
      %c0_8 = arith.constant 0 : index
      %14 = vector.load %arg4[%c0_7, %c0_8] : memref<384x128xf32, #tpu.memory_space<vmem>>, vector<384x128xf32>
      tpu.vector_store %arg4[%c0_7, %c0_8], %13 {strides = array<i32>} : memref<384x128xf32, #tpu.memory_space<vmem>>, vector<384x128xf32>,
    } else {
    }
    return
  }
  func.func @transform_0(%arg0: i32, %arg1: i32) -> (i32, i32) {
    %c0_i32 = arith.constant 0 : i32
    return %arg0, %arg1 : i32, i32
  }
  func.func @transform_1(%arg0: i32, %arg1: i32) -> (i32, i32) {
    %c0_i32 = arith.constant 0 : i32
    %c0_i32_0 = arith.constant 0 : i32
    %c0_i32_1 = arith.constant 0 : i32
    return %c0_i32, %c0_i32_0 : i32, i32
  }
  func.func @transform_2(%arg0: i32, %arg1: i32) -> (i32, i32) {
    %c0_i32 = arith.constant 0 : i32
    %c0_i32_0 = arith.constant 0 : i32
    return %arg0, %c0_i32 : i32, i32
  }
}

</mosaic_0001>

<llo_original>
// kernel: _lambda_.8
$region0: #{_lambda_.8}
  #allocation0 [shape = 'u32[]', space=smem, size = 0x4, offset = 0x4, fixed_abs, tag = 'smem constant byte address 0x4 - core index']
  #allocation1 [shape = 'u32[144,128]{1,0:T(1,128)}', space=vmem, size = 0x12000, scoped, tag = 'internal scratch']
  %s0 = inlined_call_operand.vmem [shape: bf16[384,256], index: 0, kind: input, shape index: {}]
  %s1 = inlined_call_operand.vmem [shape: bf16[256,128], index: 1, kind: input, shape index: {}]
  %s2 = inlined_call_operand.vmem [shape: f32[384,128], index: 2, kind: output, shape index: {}]
  %s3 = sld [smem:[#allocation0]]
  $region26: #{_lambda_.8} parent=0
    _
  %s5 = ssub.s32 1, %s3
  %s6 = scalar_select 0, %s5, %s3
  // Predicated region
  $region2: #{_lambda_.8} parent=0 // pred_check
    _
  $region3: #{_lambda_.8} parent=0 // pred_check_branch
    %8 = sbr.rel (0) target = $region5
  $region4: #{_lambda_.8} parent=0 // pred_region
    _
  $region5: #{_lambda_.8} parent=0 // pred_fallthru
    _
  // Predicated region
  $region6: #{_lambda_.8} parent=0 // pred_check
    _
  $region7: #{_lambda_.8} parent=0 // pred_check_branch
    %10 = sbr.rel (0) target = $region9
  $region8: #{_lambda_.8} parent=0 // pred_region
    _
  $region9: #{_lambda_.8} parent=0 // pred_fallthru
    _
  %s12 = smul.u32 0, 256
  %s13 = sshra.s32 %s12, 3
  %s14 = sand.u32 %s12, 7
  %s15 = smul.addr %s13, 4
  %s16 = scalar_lea.vmem %s1, %s15
  %v17 = vld [vmem:[%s16] sm:$0xf]
  %v18 = vld [vmem:[%s16 + $0x4] sm:$0xf]
  %v19 = vld [vmem:[%s16 + $0x8] sm:$0xf]
  %v20 = vld [vmem:[%s16 + $0xc] sm:$0xf]
  %v21 = vld [vmem:[%s16 + $0x10] sm:$0xf]
  %v22 = vld [vmem:[%s16 + $0x14] sm:$0xf]
  %v23 = vld [vmem:[%s16 + $0x18] sm:$0xf]
  %v24 = vld [vmem:[%s16 + $0x1c] sm:$0xf]
  %v25 = vld [vmem:[%s16 + $0x20] sm:$0xf]
  %v26 = vld [vmem:[%s16 + $0x24] sm:$0xf]
  %v27 = vld [vmem:[%s16 + $0x28] sm:$0xf]
  %v28 = vld [vmem:[%s16 + $0x2c] sm:$0xf]
  %v29 = vld [vmem:[%s16 + $0x30] sm:$0xf]
  %v30 = vld [vmem:[%s16 + $0x34] sm:$0xf]
  %v31 = vld [vmem:[%s16 + $0x38] sm:$0xf]
  %v32 = vld [vmem:[%s16 + $0x3c] sm:$0xf]
  %v33 = vld [vmem:[%s16 + $0x40] sm:$0xf]
  %v34 = vld [vmem:[%s16 + $0x44] sm:$0xf]
  %v35 = vld [vmem:[%s16 + $0x48] sm:$0xf]
  %v36 = vld [vmem:[%s16 + $0x4c] sm:$0xf]
  %v37 = vld [vmem:[%s16 + $0x50] sm:$0xf]
  %v38 = vld [vmem:[%s16 + $0x54] sm:$0xf]
  %v39 = vld [vmem:[%s16 + $0x58] sm:$0xf]
  %v40 = vld [vmem:[%s16 + $0x5c] sm:$0xf]
  %v41 = vld [vmem:[%s16 + $0x60] sm:$0xf]
  %v42 = vld [vmem:[%s16 + $0x64] sm:$0xf]
  %v43 = vld [vmem:[%s16 + $0x68] sm:$0xf]
  %v44 = vld [vmem:[%s16 + $0x6c] sm:$0xf]
  %v45 = vld [vmem:[%s16 + $0x70] sm:$0xf]
  %v46 = vld [vmem:[%s16 + $0x74] sm:$0xf]
  %v47 = vld [vmem:[%s16 + $0x78] sm:$0xf]
  %v48 = vld [vmem:[%s16 + $0x7c] sm:$0xf]
  %v49 = vld [vmem:[%s0] sm:$0xff]
  %v50 = vld [vmem:[%s0 + $0x8] sm:$0xff]
  %v51 = vld [vmem:[%s0 + $0x10] sm:$0xff]
  %v52 = vld [vmem:[%s0 + $0x18] sm:$0xff]
  %v53 = vld [vmem:[%s0 + $0x20] sm:$0xff]
  %v54 = vld [vmem:[%s0 + $0x28] sm:$0xff]
  %v55 = vld [vmem:[%s0 + $0x30] sm:$0xff]
  %v56 = vld [vmem:[%s0 + $0x38] sm:$0xff]
  %v57 = vld [vmem:[%s0 + $0x40] sm:$0xff]
  %v58 = vld [vmem:[%s0 + $0x48] sm:$0xff]
  %v59 = vld [vmem:[%s0 + $0x50] sm:$0xff]
  %v60 = vld [vmem:[%s0 + $0x58] sm:$0xff]
  %v61 = vld [vmem:[%s0 + $0x60] sm:$0xff]
  %v62 = vld [vmem:[%s0 + $0x68] sm:$0xff]
  %v63 = vld [vmem:[%s0 + $0x70] sm:$0xff]
  %v64 = vld [vmem:[%s0 + $0x78] sm:$0xff]
  %v65 = vld [vmem:[%s0 + $0x80] sm:$0xff]
  %v66 = vld [vmem:[%s0 + $0x88] sm:$0xff]
  %v67 = vld [vmem:[%s0 + $0x90] sm:$0xff]
  %v68 = vld [vmem:[%s0 + $0x98] sm:$0xff]
  %v69 = vld [vmem:[%s0 + $0xa0] sm:$0xff]
  %v70 = vld [vmem:[%s0 + $0xa8] sm:$0xff]
  %v71 = vld [vmem:[%s0 + $0xb0] sm:$0xff]
  %v72 = vld [vmem:[%s0 + $0xb8] sm:$0xff]
  %v73 = vld [vmem:[%s0 + $0xc0] sm:$0xff]
  %v74 = vld [vmem:[%s0 + $0xc8] sm:$0xff]
  %v75 = vld [vmem:[%s0 + $0xd0] sm:$0xff]
  %v76 = vld [vmem:[%s0 + $0xd8] sm:$0xff]
  %v77 = vld [vmem:[%s0 + $0xe0] sm:$0xff]
  %v78 = vld [vmem:[%s0 + $0xe8] sm:$0xff]
  %v79 = vld [vmem:[%s0 + $0xf0] sm:$0xff]
  %v80 = vld [vmem:[%s0 + $0xf8] sm:$0xff]
  %v81 = vld [vmem:[%s0 + $0x100] sm:$0xff]
  %v82 = vld [vmem:[%s0 + $0x108] sm:$0xff]
  %v83 = vld [vmem:[%s0 + $0x110] sm:$0xff]
  %v84 = vld [vmem:[%s0 + $0x118] sm:$0xff]
  %v85 = vld [vmem:[%s0 + $0x120] sm:$0xff]
  %v86 = vld [vmem:[%s0 + $0x128] sm:$0xff]
  %v87 = vld [vmem:[%s0 + $0x130] sm:$0xff]
  %v88 = vld [vmem:[%s0 + $0x138] sm:$0xff]
  %v89 = vld [vmem:[%s0 + $0x140] sm:$0xff]
  %v90 = vld [vmem:[%s0 + $0x148] sm:$0xff]
  %v91 = vld [vmem:[%s0 + $0x150] sm:$0xff]
  %v92 = vld [vmem:[%s0 + $0x158] sm:$0xff]
  %v93 = vld [vmem:[%s0 + $0x160] sm:$0xff]
  %v94 = vld [vmem:[%s0 + $0x168] sm:$0xff]
  %v95 = vld [vmem:[%s0 + $0x170] sm:$0xff]
  %v96 = vld [vmem:[%s0 + $0x178] sm:$0xff]
  %v145 = vunpack.c.l.b16 %v49
  %v146 = vunpack.c.h.b16 %v49
  %v147 = vunpack.c.l.b16 %v50
  %v148 = vunpack.c.h.b16 %v50
  %v149 = vunpack.c.l.b16 %v51
  %v150 = vunpack.c.h.b16 %v51
  %v151 = vunpack.c.l.b16 %v52
  %v152 = vunpack.c.h.b16 %v52
  %v153 = vunpack.c.l.b16 %v53
  %v154 = vunpack.c.h.b16 %v53
  %v155 = vunpack.c.l.b16 %v54
  %v156 = vunpack.c.h.b16 %v54
  %v157 = vunpack.c.l.b16 %v55
  %v158 = vunpack.c.h.b16 %v55
  %v159 = vunpack.c.l.b16 %v56
  %v160 = vunpack.c.h.b16 %v56
  %v161 = vunpack.c.l.b16 %v57
  %v162 = vunpack.c.h.b16 %v57
  %v163 = vunpack.c.l.b16 %v58
  %v164 = vunpack.c.h.b16 %v58
  %v165 = vunpack.c.l.b16 %v59
  %v166 = vunpack.c.h.b16 %v59
  %v167 = vunpack.c.l.b16 %v60
  %v168 = vunpack.c.h.b16 %v60
  %v169 = vunpack.c.l.b16 %v61
  %v170 = vunpack.c.h.b16 %v61
  %v171 = vunpack.c.l.b16 %v62
  %v172 = vunpack.c.h.b16 %v62
  %v173 = vunpack.c.l.b16 %v63
  %v174 = vunpack.c.h.b16 %v63
  %v175 = vunpack.c.l.b16 %v64
  %v176 = vunpack.c.h.b16 %v64
  %v177 = vunpack.c.l.b16 %v65
  %v178 = vunpack.c.h.b16 %v65
  %v179 = vunpack.c.l.b16 %v66
  %v180 = vunpack.c.h.b16 %v66
  %v181 = vunpack.c.l.b16 %v67
  %v182 = vunpack.c.h.b16 %v67
  %v183 = vunpack.c.l.b16 %v68
  %v184 = vunpack.c.h.b16 %v68
  %v185 = vunpack.c.l.b16 %v69
  %v186 = vunpack.c.h.b16 %v69
  %v187 = vunpack.c.l.b16 %v70
  %v188 = vunpack.c.h.b16 %v70
  %v189 = vunpack.c.l.b16 %v71
  %v190 = vunpack.c.h.b16 %v71
  %v191 = vunpack.c.l.b16 %v72
  %v192 = vunpack.c.h.b16 %v72
  %v193 = vunpack.c.l.b16 %v73
  %v194 = vunpack.c.h.b16 %v73
  %v195 = vunpack.c.l.b16 %v74
  %v196 = vunpack.c.h.b16 %v74
  %v197 = vunpack.c.l.b16 %v75
  %v198 = vunpack.c.h.b16 %v75
  %v199 = vunpack.c.l.b16 %v76
  %v200 = vunpack.c.h.b16 %v76
  %v201 = vunpack.c.l.b16 %v77
  %v202 = vunpack.c.h.b16 %v77
  %v203 = vunpack.c.l.b16 %v78
  %v204 = vunpack.c.h.b16 %v78
  %v205 = vunpack.c.l.b16 %v79
  %v206 = vunpack.c.h.b16 %v79
  %v207 = vunpack.c.l.b16 %v80
  %v208 = vunpack.c.h.b16 %v80
  %v209 = vunpack.c.l.b16 %v81
  %v210 = vunpack.c.h.b16 %v81
  %v211 = vunpack.c.l.b16 %v82
  %v212 = vunpack.c.h.b16 %v82
  %v213 = vunpack.c.l.b16 %v83
  %v214 = vunpack.c.h.b16 %v83
  %v215 = vunpack.c.l.b16 %v84
  %v216 = vunpack.c.h.b16 %v84
  %v217 = vunpack.c.l.b16 %v85
  %v218 = vunpack.c.h.b16 %v85
  %v219 = vunpack.c.l.b16 %v86
  %v220 = vunpack.c.h.b16 %v86
  %v221 = vunpack.c.l.b16 %v87
  %v222 = vunpack.c.h.b16 %v87
  %v223 = vunpack.c.l.b16 %v88
  %v224 = vunpack.c.h.b16 %v88
  %v225 = vunpack.c.l.b16 %v89
  %v226 = vunpack.c.h.b16 %v89
  %v227 = vunpack.c.l.b16 %v90
  %v228 = vunpack.c.h.b16 %v90
  %v229 = vunpack.c.l.b16 %v91
  %v230 = vunpack.c.h.b16 %v91
  %v231 = vunpack.c.l.b16 %v92
  %v232 = vunpack.c.h.b16 %v92
  %v233 = vunpack.c.l.b16 %v93
  %v234 = vunpack.c.h.b16 %v93
  %v235 = vunpack.c.l.b16 %v94
  %v236 = vunpack.c.h.b16 %v94
  %v237 = vunpack.c.l.b16 %v95
  %v238 = vunpack.c.h.b16 %v95
  %v239 = vunpack.c.l.b16 %v96
  %v240 = vunpack.c.h.b16 %v96
  %v241 = vpack.c.b16 %v147, %v145
  %v242 = vpack.c.b16 %v148, %v146
  %v243 = vpack.c.b16 %v151, %v149
  %v244 = vpack.c.b16 %v152, %v150
  %v245 = vpack.c.b16 %v155, %v153
  %v246 = vpack.c.b16 %v156, %v154
  %v247 = vpack.c.b16 %v159, %v157
  %v248 = vpack.c.b16 %v160, %v158
  %v249 = vpack.c.b16 %v163, %v161
  %v250 = vpack.c.b16 %v164, %v162
  %v251 = vpack.c.b16 %v167, %v165
  %v252 = vpack.c.b16 %v168, %v166
  %v253 = vpack.c.b16 %v171, %v169
  %v254 = vpack.c.b16 %v172, %v170
  %v255 = vpack.c.b16 %v175, %v173
  %v256 = vpack.c.b16 %v176, %v174
  %v257 = vpack.c.b16 %v179, %v177
  %v258 = vpack.c.b16 %v180, %v178
  %v259 = vpack.c.b16 %v183, %v181
  %v260 = vpack.c.b16 %v184, %v182
  %v261 = vpack.c.b16 %v187, %v185
  %v262 = vpack.c.b16 %v188, %v186
  %v263 = vpack.c.b16 %v191, %v189
  %v264 = vpack.c.b16 %v192, %v190
  %v265 = vpack.c.b16 %v195, %v193
  %v266 = vpack.c.b16 %v196, %v194
  %v267 = vpack.c.b16 %v199, %v197
  %v268 = vpack.c.b16 %v200, %v198
  %v269 = vpack.c.b16 %v203, %v201
  %v270 = vpack.c.b16 %v204, %v202
  %v271 = vpack.c.b16 %v207, %v205
  %v272 = vpack.c.b16 %v208, %v206
  %v273 = vpack.c.b16 %v211, %v209
  %v274 = vpack.c.b16 %v212, %v210
  %v275 = vpack.c.b16 %v215, %v213
  %v276 = vpack.c.b16 %v216, %v214
  %v277 = vpack.c.b16 %v219, %v217
  %v278 = vpack.c.b16 %v220, %v218
  %v279 = vpack.c.b16 %v223, %v221
  %v280 = vpack.c.b16 %v224, %v222
  %v281 = vpack.c.b16 %v227, %v225
  %v282 = vpack.c.b16 %v228, %v226
  %v283 = vpack.c.b16 %v231, %v229
  %v284 = vpack.c.b16 %v232, %v230
  %v285 = vpack.c.b16 %v235, %v233
  %v286 = vpack.c.b16 %v236, %v234
  %v287 = vpack.c.b16 %v239, %v237
  %v288 = vpack.c.b16 %v240, %v238
  %v369 = vunpack.c.l.b16 %v17
  %v370 = vunpack.c.l.b16 %v18
  %v371 = vunpack.c.l.b16 %v19
  %v372 = vunpack.c.l.b16 %v20
  %v373 = vunpack.c.l.b16 %v21
  %v374 = vunpack.c.l.b16 %v22
  %v375 = vunpack.c.l.b16 %v23
  %v376 = vunpack.c.l.b16 %v24
  %v377 = vunpack.c.l.b16 %v25
  %v378 = vunpack.c.l.b16 %v26
  %v379 = vunpack.c.l.b16 %v27
  %v380 = vunpack.c.l.b16 %v28
  %v381 = vunpack.c.l.b16 %v29
  %v382 = vunpack.c.l.b16 %v30
  %v383 = vunpack.c.l.b16 %v31
  %v384 = vunpack.c.l.b16 %v32
  %v385 = vunpack.c.l.b16 %v33
  %v386 = vunpack.c.l.b16 %v34
  %v387 = vunpack.c.l.b16 %v35
  %v388 = vunpack.c.l.b16 %v36
  %v389 = vunpack.c.l.b16 %v37
  %v390 = vunpack.c.l.b16 %v38
  %v391 = vunpack.c.l.b16 %v39
  %v392 = vunpack.c.l.b16 %v40
  %v393 = vunpack.c.l.b16 %v41
  %v394 = vunpack.c.l.b16 %v42
  %v395 = vunpack.c.l.b16 %v43
  %v396 = vunpack.c.l.b16 %v44
  %v397 = vunpack.c.l.b16 %v45
  %v398 = vunpack.c.l.b16 %v46
  %v399 = vunpack.c.l.b16 %v47
  %v400 = vunpack.c.l.b16 %v48
  %v401 = vpack.c.b16 %v370, %v369
  %v402 = vpack.c.b16 %v372, %v371
  %v403 = vpack.c.b16 %v374, %v373
  %v404 = vpack.c.b16 %v376, %v375
  %v405 = vpack.c.b16 %v378, %v377
  %v406 = vpack.c.b16 %v380, %v379
  %v407 = vpack.c.b16 %v382, %v381
  %v408 = vpack.c.b16 %v384, %v383
  %v409 = vpack.c.b16 %v386, %v385
  %v410 = vpack.c.b16 %v388, %v387
  %v411 = vpack.c.b16 %v390, %v389
  %v412 = vpack.c.b16 %v392, %v391
  %v413 = vpack.c.b16 %v394, %v393
  %v414 = vpack.c.b16 %v396, %v395
  %v415 = vpack.c.b16 %v398, %v397
  %v416 = vpack.c.b16 %v400, %v399
  %433 = vmatprep.subr.bf16.mxu0 0
  %434 = vmatpush1.bf16.msra.mxu0 %v408
  %435 = vmatprep.subr.bf16.mxu0 0
  %436 = vmatpush1.bf16.msra.mxu0 %v407
  %437 = vmatprep.subr.bf16.mxu0 0
  %438 = vmatpush1.bf16.msra.mxu0 %v406
  %439 = vmatprep.subr.bf16.mxu0 0
  %440 = vmatpush1.bf16.msra.mxu0 %v405
  %441 = vmatprep.subr.bf16.mxu0 0
  %442 = vmatpush1.bf16.msra.mxu0 %v404
  %443 = vmatprep.subr.bf16.mxu0 0
  %444 = vmatpush1.bf16.msra.mxu0 %v403
  %445 = vmatprep.subr.bf16.mxu0 0
  %446 = vmatpush1.bf16.msra.mxu0 %v402
  %447 = vmatprep.subr.bf16.mxu0 0
  %448 = vmatpush1.bf16.msra.mxu0 %v401
  %449 = vmatprep.subr.bf16.mxu0 0
  %450 = vmatpush2.bf16.msra.mxu0 %v416
  %451 = vmatprep.subr.bf16.mxu0 0
  %452 = vmatpush2.bf16.msra.mxu0 %v415
  %453 = vmatprep.subr.bf16.mxu0 0
  %454 = vmatpush2.bf16.msra.mxu0 %v414
  %455 = vmatprep.subr.bf16.mxu0 0
  %456 = vmatpush2.bf16.msra.mxu0 %v413
  %457 = vmatprep.subr.bf16.mxu0 0
  %458 = vmatpush2.bf16.msra.mxu0 %v412
  %459 = vmatprep.subr.bf16.mxu0 0
  %460 = vmatpush2.bf16.msra.mxu0 %v411
  %461 = vmatprep.subr.bf16.mxu0 0
  %462 = vmatpush2.bf16.msra.mxu0 %v410
  %463 = vmatprep.subr.bf16.mxu0 0
  %464 = vmatpush2.bf16.msra.mxu0 %v409
  %465 = vmatprep.mubr.bf16.mxu0 %v242
  %466 = vmatmul.mubr.bf16.gmra.mxu0 %v241
  %v467 = vpop.f32.mrf.mxu0
  %v468 = vadd.f32 0.0, %v467
  %v469 = vpop.f32.mrf.mxu0
  %v470 = vpop.f32.mrf.mxu0
  %v471 = vadd.f32 0.0, %v470
  %v472 = vpop.f32.mrf.mxu0
  %473 = vmatprep.mubr.bf16.mxu0 %v244
  %474 = vmatmul.mubr.bf16.gmra.mxu0 %v243
  %v475 = vpop.f32.mrf.mxu0
  %v476 = vadd.f32 0.0, %v475
  %v477 = vpop.f32.mrf.mxu0
  %v478 = vpop.f32.mrf.mxu0
  %v479 = vadd.f32 0.0, %v478
  %v480 = vpop.f32.mrf.mxu0
  %481 = vmatprep.mubr.bf16.mxu0 %v246
  %482 = vmatmul.mubr.bf16.gmra.mxu0 %v245
  %v483 = vpop.f32.mrf.mxu0
  %v484 = vadd.f32 0.0, %v483
  %v485 = vpop.f32.mrf.mxu0
  %v486 = vpop.f32.mrf.mxu0
  %v487 = vadd.f32 0.0, %v486
  %v488 = vpop.f32.mrf.mxu0
  %489 = vmatprep.mubr.bf16.mxu0 %v248
  %490 = vmatmul.mubr.bf16.gmra.mxu0 %v247
  %v491 = vpop.f32.mrf.mxu0
  %v492 = vadd.f32 0.0, %v491
  %v493 = vpop.f32.mrf.mxu0
  %v494 = vpop.f32.mrf.mxu0
  %v495 = vadd.f32 0.0, %v494
  %v496 = vpop.f32.mrf.mxu0
  %497 = vmatprep.mubr.bf16.mxu0 %v250
  %498 = vmatmul.mubr.bf16.gmra.mxu0 %v249
  %v499 = vpop.f32.mrf.mxu0
  %v500 = vadd.f32 0.0, %v499
  %v501 = vpop.f32.mrf.mxu0
  %v502 = vpop.f32.mrf.mxu0
  %v503 = vadd.f32 0.0, %v502
  %v504 = vpop.f32.mrf.mxu0
  %505 = vmatprep.mubr.bf16.mxu0 %v252
  %506 = vmatmul.mubr.bf16.gmra.mxu0 %v251
  %v507 = vpop.f32.mrf.mxu0
  %v508 = vadd.f32 0.0, %v507
  %v509 = vpop.f32.mrf.mxu0
  %v510 = vpop.f32.mrf.mxu0
  %v511 = vadd.f32 0.0, %v510
  %v512 = vpop.f32.mrf.mxu0
  %513 = vmatprep.mubr.bf16.mxu0 %v254
  %514 = vmatmul.mubr.bf16.gmra.mxu0 %v253
  %v515 = vpop.f32.mrf.mxu0
  %v516 = vadd.f32 0.0, %v515
  %v517 = vpop.f32.mrf.mxu0
  %v518 = vpop.f32.mrf.mxu0
  %v519 = vadd.f32 0.0, %v518
  %v520 = vpop.f32.mrf.mxu0
  %521 = vmatprep.mubr.bf16.mxu0 %v256
  %522 = vmatmul.mubr.bf16.gmra.mxu0 %v255
  %v523 = vpop.f32.mrf.mxu0
  %v524 = vadd.f32 0.0, %v523
  %v525 = vpop.f32.mrf.mxu0
  %v526 = vpop.f32.mrf.mxu0
  %v527 = vadd.f32 0.0, %v526
  %v528 = vpop.f32.mrf.mxu0
  %529 = vmatprep.mubr.bf16.mxu0 %v258
  %530 = vmatmul.mubr.bf16.gmra.mxu0 %v257
  %v531 = vpop.f32.mrf.mxu0
  %v532 = vadd.f32 0.0, %v531
  %v533 = vpop.f32.mrf.mxu0
  %v534 = vpop.f32.mrf.mxu0
  %v535 = vadd.f32 0.0, %v534
  %v536 = vpop.f32.mrf.mxu0
  %537 = vmatprep.mubr.bf16.mxu0 %v260
  %538 = vmatmul.mubr.bf16.gmra.mxu0 %v259
  %v539 = vpop.f32.mrf.mxu0
  %v540 = vadd.f32 0.0, %v539
  %v541 = vpop.f32.mrf.mxu0
  %v542 = vpop.f32.mrf.mxu0
  %v543 = vadd.f32 0.0, %v542
  %v544 = vpop.f32.mrf.mxu0
  %545 = vmatprep.mubr.bf16.mxu0 %v262
  %546 = vmatmul.mubr.bf16.gmra.mxu0 %v261
  %v547 = vpop.f32.mrf.mxu0
  %v548 = vadd.f32 0.0, %v547
  %v549 = vpop.f32.mrf.mxu0
  %v550 = vpop.f32.mrf.mxu0
  %v551 = vadd.f32 0.0, %v550
  %v552 = vpop.f32.mrf.mxu0
  %553 = vmatprep.mubr.bf16.mxu0 %v264
  %554 = vmatmul.mubr.bf16.gmra.mxu0 %v263
  %v555 = vpop.f32.mrf.mxu0
  %v556 = vadd.f32 0.0, %v555
  %v557 = vpop.f32.mrf.mxu0
  %v558 = vpop.f32.mrf.mxu0
  %v559 = vadd.f32 0.0, %v558
  %v560 = vpop.f32.mrf.mxu0
  %561 = vmatprep.mubr.bf16.mxu0 %v266
  %562 = vmatmul.mubr.bf16.gmra.mxu0 %v265
  %v563 = vpop.f32.mrf.mxu0
  %v564 = vadd.f32 0.0, %v563
  %v565 = vpop.f32.mrf.mxu0
  %v566 = vpop.f32.mrf.mxu0
  %v567 = vadd.f32 0.0, %v566
  %v568 = vpop.f32.mrf.mxu0
  %569 = vmatprep.mubr.bf16.mxu0 %v268
  %570 = vmatmul.mubr.bf16.gmra.mxu0 %v267
  %v571 = vpop.f32.mrf.mxu0
  %v572 = vadd.f32 0.0, %v571
  %v573 = vpop.f32.mrf.mxu0
  %v574 = vpop.f32.mrf.mxu0
  %v575 = vadd.f32 0.0, %v574
  %v576 = vpop.f32.mrf.mxu0
  %577 = vmatprep.mubr.bf16.mxu0 %v270
  %578 = vmatmul.mubr.bf16.gmra.mxu0 %v269
  %v579 = vpop.f32.mrf.mxu0
  %v580 = vadd.f32 0.0, %v579
  %v581 = vpop.f32.mrf.mxu0
  %v582 = vpop.f32.mrf.mxu0
  %v583 = vadd.f32 0.0, %v582
  %v584 = vpop.f32.mrf.mxu0
  %585 = vmatprep.mubr.bf16.mxu0 %v272
  %586 = vmatmul.mubr.bf16.gmra.mxu0 %v271
  %v587 = vpop.f32.mrf.mxu0
  %v588 = vadd.f32 0.0, %v587
  %v589 = vpop.f32.mrf.mxu0
  %v590 = vpop.f32.mrf.mxu0
  %v591 = vadd.f32 0.0, %v590
  %v592 = vpop.f32.mrf.mxu0
  %593 = vmatprep.mubr.bf16.mxu0 %v274
  %594 = vmatmul.mubr.bf16.gmra.mxu0 %v273
  %v595 = vpop.f32.mrf.mxu0
  %v596 = vadd.f32 0.0, %v595
  %v597 = vpop.f32.mrf.mxu0
  %v598 = vpop.f32.mrf.mxu0
  %v599 = vadd.f32 0.0, %v598
  %v600 = vpop.f32.mrf.mxu0
  %601 = vmatprep.mubr.bf16.mxu0 %v276
  %602 = vmatmul.mubr.bf16.gmra.mxu0 %v275
  %v603 = vpop.f32.mrf.mxu0
  %v604 = vadd.f32 0.0, %v603
  %v605 = vpop.f32.mrf.mxu0
  %v606 = vpop.f32.mrf.mxu0
  %v607 = vadd.f32 0.0, %v606
  %v608 = vpop.f32.mrf.mxu0
  %609 = vmatprep.mubr.bf16.mxu0 %v278
  %610 = vmatmul.mubr.bf16.gmra.mxu0 %v277
  %v611 = vpop.f32.mrf.mxu0
  %v612 = vadd.f32 0.0, %v611
  %v613 = vpop.f32.mrf.mxu0
  %v614 = vpop.f32.mrf.mxu0
  %v615 = vadd.f32 0.0, %v614
  %v616 = vpop.f32.mrf.mxu0
  %617 = vmatprep.mubr.bf16.mxu0 %v280
  %618 = vmatmul.mubr.bf16.gmra.mxu0 %v279
  %v619 = vpop.f32.mrf.mxu0
  %v620 = vadd.f32 0.0, %v619
  %v621 = vpop.f32.mrf.mxu0
  %v622 = vpop.f32.mrf.mxu0
  %v623 = vadd.f32 0.0, %v622
  %v624 = vpop.f32.mrf.mxu0
  %625 = vmatprep.mubr.bf16.mxu0 %v282
  %626 = vmatmul.mubr.bf16.gmra.mxu0 %v281
  %v627 = vpop.f32.mrf.mxu0
  %v628 = vadd.f32 0.0, %v627
  %v629 = vpop.f32.mrf.mxu0
  %v630 = vpop.f32.mrf.mxu0
  %v631 = vadd.f32 0.0, %v630
  %v632 = vpop.f32.mrf.mxu0
  %633 = vmatprep.mubr.bf16.mxu0 %v284
  %634 = vmatmul.mubr.bf16.gmra.mxu0 %v283
  %v635 = vpop.f32.mrf.mxu0
  %v636 = vadd.f32 0.0, %v635
  %v637 = vpop.f32.mrf.mxu0
  %v638 = vpop.f32.mrf.mxu0
  %v639 = vadd.f32 0.0, %v638
  %v640 = vpop.f32.mrf.mxu0
  %641 = vmatprep.mubr.bf16.mxu0 %v286
  %642 = vmatmul.mubr.bf16.gmra.mxu0 %v285
  %v643 = vpop.f32.mrf.mxu0
  %v644 = vadd.f32 0.0, %v643
  %v645 = vpop.f32.mrf.mxu0
  %v646 = vpop.f32.mrf.mxu0
  %v647 = vadd.f32 0.0, %v646
  %v648 = vpop.f32.mrf.mxu0
  %649 = vmatprep.mubr.bf16.mxu0 %v288
  %650 = vmatmul.mubr.bf16.gmra.mxu0 %v287
  %v651 = vpop.f32.mrf.mxu0
  %v652 = vadd.f32 0.0, %v651
  %v653 = vpop.f32.mrf.mxu0
  %v654 = vpop.f32.mrf.mxu0
  %v655 = vadd.f32 0.0, %v654
  %v656 = vpop.f32.mrf.mxu0
  %657 = vdwg.mxu0
  %p658 = scmp.eq.s32.totalorder 0, 0
  // Predicated region
  $region10: #{_lambda_.8} parent=0 // pred_check
    %p659 = pneg %p658
  $region11: #{_lambda_.8} parent=0 // pred_check_branch
    %661 = sbr.rel (%p659) target = $region13
  $region12: #{_lambda_.8} parent=0 // pred_region
    %662 = vst [vmem:[%s2] sm:$0xff] %v468
    %663 = vst [vmem:[%s2 + $0x8] sm:$0xff] %v471
    %664 = vst [vmem:[%s2 + $0x10] sm:$0xff] %v476
    %665 = vst [vmem:[%s2 + $0x18] sm:$0xff] %v479
    %666 = vst [vmem:[%s2 + $0x20] sm:$0xff] %v484
    %667 = vst [vmem:[%s2 + $0x28] sm:$0xff] %v487
    %668 = vst [vmem:[%s2 + $0x30] sm:$0xff] %v492
    %669 = vst [vmem:[%s2 + $0x38] sm:$0xff] %v495
    %670 = vst [vmem:[%s2 + $0x40] sm:$0xff] %v500
    %671 = vst [vmem:[%s2 + $0x48] sm:$0xff] %v503
    %672 = vst [vmem:[%s2 + $0x50] sm:$0xff] %v508
    %673 = vst [vmem:[%s2 + $0x58] sm:$0xff] %v511
    %674 = vst [vmem:[%s2 + $0x60] sm:$0xff] %v516
    %675 = vst [vmem:[%s2 + $0x68] sm:$0xff] %v519
    %676 = vst [vmem:[%s2 + $0x70] sm:$0xff] %v524
    %677 = vst [vmem:[%s2 + $0x78] sm:$0xff] %v527
    %678 = vst [vmem:[%s2 + $0x80] sm:$0xff] %v532
    %679 = vst [vmem:[%s2 + $0x88] sm:$0xff] %v535
    %680 = vst [vmem:[%s2 + $0x90] sm:$0xff] %v540
    %681 = vst [vmem:[%s2 + $0x98] sm:$0xff] %v543
    %682 = vst [vmem:[%s2 + $0xa0] sm:$0xff] %v548
    %683 = vst [vmem:[%s2 + $0xa8] sm:$0xff] %v551
    %684 = vst [vmem:[%s2 + $0xb0] sm:$0xff] %v556
    %685 = vst [vmem:[%s2 + $0xb8] sm:$0xff] %v559
    %686 = vst [vmem:[%s2 + $0xc0] sm:$0xff] %v564
    %687 = vst [vmem:[%s2 + $0xc8] sm:$0xff] %v567
    %688 = vst [vmem:[%s2 + $0xd0] sm:$0xff] %v572
    %689 = vst [vmem:[%s2 + $0xd8] sm:$0xff] %v575
    %690 = vst [vmem:[%s2 + $0xe0] sm:$0xff] %v580
    %691 = vst [vmem:[%s2 + $0xe8] sm:$0xff] %v583
    %692 = vst [vmem:[%s2 + $0xf0] sm:$0xff] %v588
    %693 = vst [vmem:[%s2 + $0xf8] sm:$0xff] %v591
    %694 = vst [vmem:[%s2 + $0x100] sm:$0xff] %v596
    %695 = vst [vmem:[%s2 + $0x108] sm:$0xff] %v599
    %696 = vst [vmem:[%s2 + $0x110] sm:$0xff] %v604
    %697 = vst [vmem:[%s2 + $0x118] sm:$0xff] %v607
    %698 = vst [vmem:[%s2 + $0x120] sm:$0xff] %v612
    %699 = vst [vmem:[%s2 + $0x128] sm:$0xff] %v615
    %700 = vst [vmem:[%s2 + $0x130] sm:$0xff] %v620
    %701 = vst [vmem:[%s2 + $0x138] sm:$0xff] %v623
    %702 = vst [vmem:[%s2 + $0x140] sm:$0xff] %v628
    %703 = vst [vmem:[%s2 + $0x148] sm:$0xff] %v631
    %704 = vst [vmem:[%s2 + $0x150] sm:$0xff] %v636
    %705 = vst [vmem:[%s2 + $0x158] sm:$0xff] %v639
    %706 = vst [vmem:[%s2 + $0x160] sm:$0xff] %v644
    %707 = vst [vmem:[%s2 + $0x168] sm:$0xff] %v647
    %708 = vst [vmem:[%s2 + $0x170] sm:$0xff] %v652
    %709 = vst [vmem:[%s2 + $0x178] sm:$0xff] %v655
  $region13: #{_lambda_.8} parent=0 // pred_fallthru
    _
  %p710 = scmp.gt.s32.totalorder 0, 0
  // Predicated region
  $region14: #{_lambda_.8} parent=0 // pred_check
    %p711 = pneg %p710
  $region15: #{_lambda_.8} parent=0 // pred_check_branch
    %713 = sbr.rel (%p711) target = $region17
  $region16: #{_lambda_.8} parent=0 // pred_region
    %v714 = vld [vmem:[%s2] sm:$0xff]
    %v715 = vld [vmem:[%s2 + $0x8] sm:$0xff]
    %v716 = vld [vmem:[%s2 + $0x10] sm:$0xff]
    %v717 = vld [vmem:[%s2 + $0x18] sm:$0xff]
    %v718 = vld [vmem:[%s2 + $0x20] sm:$0xff]
    %v719 = vld [vmem:[%s2 + $0x28] sm:$0xff]
    %v720 = vld [vmem:[%s2 + $0x30] sm:$0xff]
    %v721 = vld [vmem:[%s2 + $0x38] sm:$0xff]
    %v722 = vld [vmem:[%s2 + $0x40] sm:$0xff]
    %v723 = vld [vmem:[%s2 + $0x48] sm:$0xff]
    %v724 = vld [vmem:[%s2 + $0x50] sm:$0xff]
    %v725 = vld [vmem:[%s2 + $0x58] sm:$0xff]
    %v726 = vld [vmem:[%s2 + $0x60] sm:$0xff]
    %v727 = vld [vmem:[%s2 + $0x68] sm:$0xff]
    %v728 = vld [vmem:[%s2 + $0x70] sm:$0xff]
    %v729 = vld [vmem:[%s2 + $0x78] sm:$0xff]
    %v730 = vld [vmem:[%s2 + $0x80] sm:$0xff]
    %v731 = vld [vmem:[%s2 + $0x88] sm:$0xff]
    %v732 = vld [vmem:[%s2 + $0x90] sm:$0xff]
    %v733 = vld [vmem:[%s2 + $0x98] sm:$0xff]
    %v734 = vld [vmem:[%s2 + $0xa0] sm:$0xff]
    %v735 = vld [vmem:[%s2 + $0xa8] sm:$0xff]
    %v736 = vld [vmem:[%s2 + $0xb0] sm:$0xff]
    %v737 = vld [vmem:[%s2 + $0xb8] sm:$0xff]
    %v738 = vld [vmem:[%s2 + $0xc0] sm:$0xff]
    %v739 = vld [vmem:[%s2 + $0xc8] sm:$0xff]
    %v740 = vld [vmem:[%s2 + $0xd0] sm:$0xff]
    %v741 = vld [vmem:[%s2 + $0xd8] sm:$0xff]
    %v742 = vld [vmem:[%s2 + $0xe0] sm:$0xff]
    %v743 = vld [vmem:[%s2 + $0xe8] sm:$0xff]
    %v744 = vld [vmem:[%s2 + $0xf0] sm:$0xff]
    %v745 = vld [vmem:[%s2 + $0xf8] sm:$0xff]
    %v746 = vld [vmem:[%s2 + $0x100] sm:$0xff]
    %v747 = vld [vmem:[%s2 + $0x108] sm:$0xff]
    %v748 = vld [vmem:[%s2 + $0x110] sm:$0xff]
    %v749 = vld [vmem:[%s2 + $0x118] sm:$0xff]
    %v750 = vld [vmem:[%s2 + $0x120] sm:$0xff]
    %v751 = vld [vmem:[%s2 + $0x128] sm:$0xff]
    %v752 = vld [vmem:[%s2 + $0x130] sm:$0xff]
    %v753 = vld [vmem:[%s2 + $0x138] sm:$0xff]
    %v754 = vld [vmem:[%s2 + $0x140] sm:$0xff]
    %v755 = vld [vmem:[%s2 + $0x148] sm:$0xff]
    %v756 = vld [vmem:[%s2 + $0x150] sm:$0xff]
    %v757 = vld [vmem:[%s2 + $0x158] sm:$0xff]
    %v758 = vld [vmem:[%s2 + $0x160] sm:$0xff]
    %v759 = vld [vmem:[%s2 + $0x168] sm:$0xff]
    %v760 = vld [vmem:[%s2 + $0x170] sm:$0xff]
    %v761 = vld [vmem:[%s2 + $0x178] sm:$0xff]
    %v762 = vadd.f32 %v714, %v468
    %v763 = vadd.f32 %v715, %v471
    %v764 = vadd.f32 %v716, %v476
    %v765 = vadd.f32 %v717, %v479
    %v766 = vadd.f32 %v718, %v484
    %v767 = vadd.f32 %v719, %v487
    %v768 = vadd.f32 %v720, %v492
    %v769 = vadd.f32 %v721, %v495
    %v770 = vadd.f32 %v722, %v500
    %v771 = vadd.f32 %v723, %v503
    %v772 = vadd.f32 %v724, %v508
    %v773 = vadd.f32 %v725, %v511
    %v774 = vadd.f32 %v726, %v516
    %v775 = vadd.f32 %v727, %v519
    %v776 = vadd.f32 %v728, %v524
    %v777 = vadd.f32 %v729, %v527
    %v778 = vadd.f32 %v730, %v532
    %v779 = vadd.f32 %v731, %v535
    %v780 = vadd.f32 %v732, %v540
    %v781 = vadd.f32 %v733, %v543
    %v782 = vadd.f32 %v734, %v548
    %v783 = vadd.f32 %v735, %v551
    %v784 = vadd.f32 %v736, %v556
    %v785 = vadd.f32 %v737, %v559
    %v786 = vadd.f32 %v738, %v564
    %v787 = vadd.f32 %v739, %v567
    %v788 = vadd.f32 %v740, %v572
    %v789 = vadd.f32 %v741, %v575
    %v790 = vadd.f32 %v742, %v580
    %v791 = vadd.f32 %v743, %v583
    %v792 = vadd.f32 %v744, %v588
    %v793 = vadd.f32 %v745, %v591
    %v794 = vadd.f32 %v746, %v596
    %v795 = vadd.f32 %v747, %v599
    %v796 = vadd.f32 %v748, %v604
    %v797 = vadd.f32 %v749, %v607
    %v798 = vadd.f32 %v750, %v612
    %v799 = vadd.f32 %v751, %v615
    %v800 = vadd.f32 %v752, %v620
    %v801 = vadd.f32 %v753, %v623
    %v802 = vadd.f32 %v754, %v628
    %v803 = vadd.f32 %v755, %v631
    %v804 = vadd.f32 %v756, %v636
    %v805 = vadd.f32 %v757, %v639
    %v806 = vadd.f32 %v758, %v644
    %v807 = vadd.f32 %v759, %v647
    %v808 = vadd.f32 %v760, %v652
    %v809 = vadd.f32 %v761, %v655
    %810 = vst [vmem:[%s2] sm:$0xff] %v762
    %811 = vst [vmem:[%s2 + $0x8] sm:$0xff] %v763
    %812 = vst [vmem:[%s2 + $0x10] sm:$0xff] %v764
    %813 = vst [vmem:[%s2 + $0x18] sm:$0xff] %v765
    %814 = vst [vmem:[%s2 + $0x20] sm:$0xff] %v766
    %815 = vst [vmem:[%s2 + $0x28] sm:$0xff] %v767
    %816 = vst [vmem:[%s2 + $0x30] sm:$0xff] %v768
    %817 = vst [vmem:[%s2 + $0x38] sm:$0xff] %v769
    %818 = vst [vmem:[%s2 + $0x40] sm:$0xff] %v770
    %819 = vst [vmem:[%s2 + $0x48] sm:$0xff] %v771
    %820 = vst [vmem:[%s2 + $0x50] sm:$0xff] %v772
    %821 = vst [vmem:[%s2 + $0x58] sm:$0xff] %v773
    %822 = vst [vmem:[%s2 + $0x60] sm:$0xff] %v774
    %823 = vst [vmem:[%s2 + $0x68] sm:$0xff] %v775
    %824 = vst [vmem:[%s2 + $0x70] sm:$0xff] %v776
    %825 = vst [vmem:[%s2 + $0x78] sm:$0xff] %v777
    %826 = vst [vmem:[%s2 + $0x80] sm:$0xff] %v778
    %827 = vst [vmem:[%s2 + $0x88] sm:$0xff] %v779
    %828 = vst [vmem:[%s2 + $0x90] sm:$0xff] %v780
    %829 = vst [vmem:[%s2 + $0x98] sm:$0xff] %v781
    %830 = vst [vmem:[%s2 + $0xa0] sm:$0xff] %v782
    %831 = vst [vmem:[%s2 + $0xa8] sm:$0xff] %v783
    %832 = vst [vmem:[%s2 + $0xb0] sm:$0xff] %v784
    %833 = vst [vmem:[%s2 + $0xb8] sm:$0xff] %v785
    %834 = vst [vmem:[%s2 + $0xc0] sm:$0xff] %v786
    %835 = vst [vmem:[%s2 + $0xc8] sm:$0xff] %v787
    %836 = vst [vmem:[%s2 + $0xd0] sm:$0xff] %v788
    %837 = vst [vmem:[%s2 + $0xd8] sm:$0xff] %v789
    %838 = vst [vmem:[%s2 + $0xe0] sm:$0xff] %v790
    %839 = vst [vmem:[%s2 + $0xe8] sm:$0xff] %v791
    %840 = vst [vmem:[%s2 + $0xf0] sm:$0xff] %v792
    %841 = vst [vmem:[%s2 + $0xf8] sm:$0xff] %v793
    %842 = vst [vmem:[%s2 + $0x100] sm:$0xff] %v794
    %843 = vst [vmem:[%s2 + $0x108] sm:$0xff] %v795
    %844 = vst [vmem:[%s2 + $0x110] sm:$0xff] %v796
    %845 = vst [vmem:[%s2 + $0x118] sm:$0xff] %v797
    %846 = vst [vmem:[%s2 + $0x120] sm:$0xff] %v798
    %847 = vst [vmem:[%s2 + $0x128] sm:$0xff] %v799
    %848 = vst [vmem:[%s2 + $0x130] sm:$0xff] %v800
    %849 = vst [vmem:[%s2 + $0x138] sm:$0xff] %v801
    %850 = vst [vmem:[%s2 + $0x140] sm:$0xff] %v802
    %851 = vst [vmem:[%s2 + $0x148] sm:$0xff] %v803
    %852 = vst [vmem:[%s2 + $0x150] sm:$0xff] %v804
    %853 = vst [vmem:[%s2 + $0x158] sm:$0xff] %v805
    %854 = vst [vmem:[%s2 + $0x160] sm:$0xff] %v806
    %855 = vst [vmem:[%s2 + $0x168] sm:$0xff] %v807
    %856 = vst [vmem:[%s2 + $0x170] sm:$0xff] %v808
    %857 = vst [vmem:[%s2 + $0x178] sm:$0xff] %v809
  $region17: #{_lambda_.8} parent=0 // pred_fallthru
    _
  // Predicated region
  $region18: #{_lambda_.8} parent=0 // pred_check
    _
  $region19: #{_lambda_.8} parent=0 // pred_check_branch
    %859 = sbr.rel (0) target = $region21
  $region20: #{_lambda_.8} parent=0 // pred_region
    _
  $region21: #{_lambda_.8} parent=0 // pred_fallthru
    _
  // Predicated region
  $region22: #{_lambda_.8} parent=0 // pred_check
    _
  $region23: #{_lambda_.8} parent=0 // pred_check_branch
    %861 = sbr.rel (0) target = $region25
  $region24: #{_lambda_.8} parent=0 // pred_region
    _
  $region25: #{_lambda_.8} parent=0 // pred_fallthru
    _

// kernel: _lambda_.7
$region0: #{_lambda_.7}
  #allocation0 [shape = 'u32[]', space=smem, size = 0x4, offset = 0x4, fixed_abs, tag = 'smem constant byte address 0x4 - core index']
  #allocation1 [shape = 'u32[144,128]{1,0:T(1,128)}', space=vmem, size = 0x12000, scoped, tag = 'internal scratch']
  %s0 = inlined_call_operand.vmem [shape: bf16[256,384], index: 0, kind: input, shape index: {}]
  %s1 = inlined_call_operand.vmem [shape: bf16[384,128], index: 1, kind: input, shape index: {}]
  %s2 = inlined_call_operand.vmem [shape: f32[256,128], index: 2, kind: output, shape index: {}]
  %s3 = sld [smem:[#allocation0]]
  $region26: #{_lambda_.7} parent=0
    _
  %s5 = ssub.s32 1, %s3
  %s6 = scalar_select 0, %s5, %s3
  // Predicated region
  $region2: #{_lambda_.7} parent=0 // pred_check
    _
  $region3: #{_lambda_.7} parent=0 // pred_check_branch
    %8 = sbr.rel (0) target = $region5
  $region4: #{_lambda_.7} parent=0 // pred_region
    _
  $region5: #{_lambda_.7} parent=0 // pred_fallthru
    _
  // Predicated region
  $region6: #{_lambda_.7} parent=0 // pred_check
    _
  $region7: #{_lambda_.7} parent=0 // pred_check_branch
    %10 = sbr.rel (0) target = $region9
  $region8: #{_lambda_.7} parent=0 // pred_region
    _
  $region9: #{_lambda_.7} parent=0 // pred_fallthru
    _
  %s12 = smul.u32 0, 384
  %s13 = sshra.s32 %s12, 3
  %s14 = sand.u32 %s12, 7
  %s15 = smul.addr %s13, 4
  %s16 = scalar_lea.vmem %s1, %s15
  %v17 = vld [vmem:[%s16] sm:$0xf]
  %v18 = vld [vmem:[%s16 + $0x4] sm:$0xf]
  %v19 = vld [vmem:[%s16 + $0x8] sm:$0xf]
  %v20 = vld [vmem:[%s16 + $0xc] sm:$0xf]
  %v21 = vld [vmem:[%s16 + $0x10] sm:$0xf]
  %v22 = vld [vmem:[%s16 + $0x14] sm:$0xf]
  %v23 = vld [vmem:[%s16 + $0x18] sm:$0xf]
  %v24 = vld [vmem:[%s16 + $0x1c] sm:$0xf]
  %v25 = vld [vmem:[%s16 + $0x20] sm:$0xf]
  %v26 = vld [vmem:[%s16 + $0x24] sm:$0xf]
  %v27 = vld [vmem:[%s16 + $0x28] sm:$0xf]
  %v28 = vld [vmem:[%s16 + $0x2c] sm:$0xf]
  %v29 = vld [vmem:[%s16 + $0x30] sm:$0xf]
  %v30 = vld [vmem:[%s16 + $0x34] sm:$0xf]
  %v31 = vld [vmem:[%s16 + $0x38] sm:$0xf]
  %v32 = vld [vmem:[%s16 + $0x3c] sm:$0xf]
  %v33 = vld [vmem:[%s16 + $0x40] sm:$0xf]
  %v34 = vld [vmem:[%s16 + $0x44] sm:$0xf]
  %v35 = vld [vmem:[%s16 + $0x48] sm:$0xf]
  %v36 = vld [vmem:[%s16 + $0x4c] sm:$0xf]
  %v37 = vld [vmem:[%s16 + $0x50] sm:$0xf]
  %v38 = vld [vmem:[%s16 + $0x54] sm:$0xf]
  %v39 = vld [vmem:[%s16 + $0x58] sm:$0xf]
  %v40 = vld [vmem:[%s16 + $0x5c] sm:$0xf]
  %v41 = vld [vmem:[%s16 + $0x60] sm:$0xf]
  %v42 = vld [vmem:[%s16 + $0x64] sm:$0xf]
  %v43 = vld [vmem:[%s16 + $0x68] sm:$0xf]
  %v44 = vld [vmem:[%s16 + $0x6c] sm:$0xf]
  %v45 = vld [vmem:[%s16 + $0x70] sm:$0xf]
  %v46 = vld [vmem:[%s16 + $0x74] sm:$0xf]
  %v47 = vld [vmem:[%s16 + $0x78] sm:$0xf]
  %v48 = vld [vmem:[%s16 + $0x7c] sm:$0xf]
  %v49 = vld [vmem:[%s16 + $0x80] sm:$0xf]
  %v50 = vld [vmem:[%s16 + $0x84] sm:$0xf]
  %v51 = vld [vmem:[%s16 + $0x88] sm:$0xf]
  %v52 = vld [vmem:[%s16 + $0x8c] sm:$0xf]
  %v53 = vld [vmem:[%s16 + $0x90] sm:$0xf]
  %v54 = vld [vmem:[%s16 + $0x94] sm:$0xf]
  %v55 = vld [vmem:[%s16 + $0x98] sm:$0xf]
  %v56 = vld [vmem:[%s16 + $0x9c] sm:$0xf]
  %v57 = vld [vmem:[%s16 + $0xa0] sm:$0xf]
  %v58 = vld [vmem:[%s16 + $0xa4] sm:$0xf]
  %v59 = vld [vmem:[%s16 + $0xa8] sm:$0xf]
  %v60 = vld [vmem:[%s16 + $0xac] sm:$0xf]
  %v61 = vld [vmem:[%s16 + $0xb0] sm:$0xf]
  %v62 = vld [vmem:[%s16 + $0xb4] sm:$0xf]
  %v63 = vld [vmem:[%s16 + $0xb8] sm:$0xf]
  %v64 = vld [vmem:[%s16 + $0xbc] sm:$0xf]
  %v65 = vld [vmem:[%s0] sm:$0xff]
  %v66 = vld [vmem:[%s0 + $0x8] sm:$0xf]
  %v67 = vld [vmem:[%s0 + $0xc] sm:$0xff]
  %v68 = vld [vmem:[%s0 + $0x14] sm:$0xf]
  %v69 = vld [vmem:[%s0 + $0x18] sm:$0xff]
  %v70 = vld [vmem:[%s0 + $0x20] sm:$0xf]
  %v71 = vld [vmem:[%s0 + $0x24] sm:$0xff]
  %v72 = vld [vmem:[%s0 + $0x2c] sm:$0xf]
  %v73 = vld [vmem:[%s0 + $0x30] sm:$0xff]
  %v74 = vld [vmem:[%s0 + $0x38] sm:$0xf]
  %v75 = vld [vmem:[%s0 + $0x3c] sm:$0xff]
  %v76 = vld [vmem:[%s0 + $0x44] sm:$0xf]
  %v77 = vld [vmem:[%s0 + $0x48] sm:$0xff]
  %v78 = vld [vmem:[%s0 + $0x50] sm:$0xf]
  %v79 = vld [vmem:[%s0 + $0x54] sm:$0xff]
  %v80 = vld [vmem:[%s0 + $0x5c] sm:$0xf]
  %v81 = vld [vmem:[%s0 + $0x60] sm:$0xff]
  %v82 = vld [vmem:[%s0 + $0x68] sm:$0xf]
  %v83 = vld [vmem:[%s0 + $0x6c] sm:$0xff]
  %v84 = vld [vmem:[%s0 + $0x74] sm:$0xf]
  %v85 = vld [vmem:[%s0 + $0x78] sm:$0xff]
  %v86 = vld [vmem:[%s0 + $0x80] sm:$0xf]
  %v87 = vld [vmem:[%s0 + $0x84] sm:$0xff]
  %v88 = vld [vmem:[%s0 + $0x8c] sm:$0xf]
  %v89 = vld [vmem:[%s0 + $0x90] sm:$0xff]
  %v90 = vld [vmem:[%s0 + $0x98] sm:$0xf]
  %v91 = vld [vmem:[%s0 + $0x9c] sm:$0xff]
  %v92 = vld [vmem:[%s0 + $0xa4] sm:$0xf]
  %v93 = vld [vmem:[%s0 + $0xa8] sm:$0xff]
  %v94 = vld [vmem:[%s0 + $0xb0] sm:$0xf]
  %v95 = vld [vmem:[%s0 + $0xb4] sm:$0xff]
  %v96 = vld [vmem:[%s0 + $0xbc] sm:$0xf]
  %v97 = vld [vmem:[%s0 + $0xc0] sm:$0xff]
  %v98 = vld [vmem:[%s0 + $0xc8] sm:$0xf]
  %v99 = vld [vmem:[%s0 + $0xcc] sm:$0xff]
  %v100 = vld [vmem:[%s0 + $0xd4] sm:$0xf]
  %v101 = vld [vmem:[%s0 + $0xd8] sm:$0xff]
  %v102 = vld [vmem:[%s0 + $0xe0] sm:$0xf]
  %v103 = vld [vmem:[%s0 + $0xe4] sm:$0xff]
  %v104 = vld [vmem:[%s0 + $0xec] sm:$0xf]
  %v105 = vld [vmem:[%s0 + $0xf0] sm:$0xff]
  %v106 = vld [vmem:[%s0 + $0xf8] sm:$0xf]
  %v107 = vld [vmem:[%s0 + $0xfc] sm:$0xff]
  %v108 = vld [vmem:[%s0 + $0x104] sm:$0xf]
  %v109 = vld [vmem:[%s0 + $0x108] sm:$0xff]
  %v110 = vld [vmem:[%s0 + $0x110] sm:$0xf]
  %v111 = vld [vmem:[%s0 + $0x114] sm:$0xff]
  %v112 = vld [vmem:[%s0 + $0x11c] sm:$0xf]
  %v113 = vld [vmem:[%s0 + $0x120] sm:$0xff]
  %v114 = vld [vmem:[%s0 + $0x128] sm:$0xf]
  %v115 = vld [vmem:[%s0 + $0x12c] sm:$0xff]
  %v116 = vld [vmem:[%s0 + $0x134] sm:$0xf]
  %v117 = vld [vmem:[%s0 + $0x138] sm:$0xff]
  %v118 = vld [vmem:[%s0 + $0x140] sm:$0xf]
  %v119 = vld [vmem:[%s0 + $0x144] sm:$0xff]
  %v120 = vld [vmem:[%s0 + $0x14c] sm:$0xf]
  %v121 = vld [vmem:[%s0 + $0x150] sm:$0xff]
  %v122 = vld [vmem:[%s0 + $0x158] sm:$0xf]
  %v123 = vld [vmem:[%s0 + $0x15c] sm:$0xff]
  %v124 = vld [vmem:[%s0 + $0x164] sm:$0xf]
  %v125 = vld [vmem:[%s0 + $0x168] sm:$0xff]
  %v126 = vld [vmem:[%s0 + $0x170] sm:$0xf]
  %v127 = vld [vmem:[%s0 + $0x174] sm:$0xff]
  %v128 = vld [vmem:[%s0 + $0x17c] sm:$0xf]
  %v193 = vunpack.c.l.b16 %v65
  %v194 = vunpack.c.h.b16 %v65
  %v195 = vunpack.c.l.b16 %v66
  %v196 = vunpack.c.l.b16 %v67
  %v197 = vunpack.c.h.b16 %v67
  %v198 = vunpack.c.l.b16 %v68
  %v199 = vunpack.c.l.b16 %v69
  %v200 = vunpack.c.h.b16 %v69
  %v201 = vunpack.c.l.b16 %v70
  %v202 = vunpack.c.l.b16 %v71
  %v203 = vunpack.c.h.b16 %v71
  %v204 = vunpack.c.l.b16 %v72
  %v205 = vunpack.c.l.b16 %v73
  %v206 = vunpack.c.h.b16 %v73
  %v207 = vunpack.c.l.b16 %v74
  %v208 = vunpack.c.l.b16 %v75
  %v209 = vunpack.c.h.b16 %v75
  %v210 = vunpack.c.l.b16 %v76
  %v211 = vunpack.c.l.b16 %v77
  %v212 = vunpack.c.h.b16 %v77
  %v213 = vunpack.c.l.b16 %v78
  %v214 = vunpack.c.l.b16 %v79
  %v215 = vunpack.c.h.b16 %v79
  %v216 = vunpack.c.l.b16 %v80
  %v217 = vunpack.c.l.b16 %v81
  %v218 = vunpack.c.h.b16 %v81
  %v219 = vunpack.c.l.b16 %v82
  %v220 = vunpack.c.l.b16 %v83
  %v221 = vunpack.c.h.b16 %v83
  %v222 = vunpack.c.l.b16 %v84
  %v223 = vunpack.c.l.b16 %v85
  %v224 = vunpack.c.h.b16 %v85
  %v225 = vunpack.c.l.b16 %v86
  %v226 = vunpack.c.l.b16 %v87
  %v227 = vunpack.c.h.b16 %v87
  %v228 = vunpack.c.l.b16 %v88
  %v229 = vunpack.c.l.b16 %v89
  %v230 = vunpack.c.h.b16 %v89
  %v231 = vunpack.c.l.b16 %v90
  %v232 = vunpack.c.l.b16 %v91
  %v233 = vunpack.c.h.b16 %v91
  %v234 = vunpack.c.l.b16 %v92
  %v235 = vunpack.c.l.b16 %v93
  %v236 = vunpack.c.h.b16 %v93
  %v237 = vunpack.c.l.b16 %v94
  %v238 = vunpack.c.l.b16 %v95
  %v239 = vunpack.c.h.b16 %v95
  %v240 = vunpack.c.l.b16 %v96
  %v241 = vunpack.c.l.b16 %v97
  %v242 = vunpack.c.h.b16 %v97
  %v243 = vunpack.c.l.b16 %v98
  %v244 = vunpack.c.l.b16 %v99
  %v245 = vunpack.c.h.b16 %v99
  %v246 = vunpack.c.l.b16 %v100
  %v247 = vunpack.c.l.b16 %v101
  %v248 = vunpack.c.h.b16 %v101
  %v249 = vunpack.c.l.b16 %v102
  %v250 = vunpack.c.l.b16 %v103
  %v251 = vunpack.c.h.b16 %v103
  %v252 = vunpack.c.l.b16 %v104
  %v253 = vunpack.c.l.b16 %v105
  %v254 = vunpack.c.h.b16 %v105
  %v255 = vunpack.c.l.b16 %v106
  %v256 = vunpack.c.l.b16 %v107
  %v257 = vunpack.c.h.b16 %v107
  %v258 = vunpack.c.l.b16 %v108
  %v259 = vunpack.c.l.b16 %v109
  %v260 = vunpack.c.h.b16 %v109
  %v261 = vunpack.c.l.b16 %v110
  %v262 = vunpack.c.l.b16 %v111
  %v263 = vunpack.c.h.b16 %v111
  %v264 = vunpack.c.l.b16 %v112
  %v265 = vunpack.c.l.b16 %v113
  %v266 = vunpack.c.h.b16 %v113
  %v267 = vunpack.c.l.b16 %v114
  %v268 = vunpack.c.l.b16 %v115
  %v269 = vunpack.c.h.b16 %v115
  %v270 = vunpack.c.l.b16 %v116
  %v271 = vunpack.c.l.b16 %v117
  %v272 = vunpack.c.h.b16 %v117
  %v273 = vunpack.c.l.b16 %v118
  %v274 = vunpack.c.l.b16 %v119
  %v275 = vunpack.c.h.b16 %v119
  %v276 = vunpack.c.l.b16 %v120
  %v277 = vunpack.c.l.b16 %v121
  %v278 = vunpack.c.h.b16 %v121
  %v279 = vunpack.c.l.b16 %v122
  %v280 = vunpack.c.l.b16 %v123
  %v281 = vunpack.c.h.b16 %v123
  %v282 = vunpack.c.l.b16 %v124
  %v283 = vunpack.c.l.b16 %v125
  %v284 = vunpack.c.h.b16 %v125
  %v285 = vunpack.c.l.b16 %v126
  %v286 = vunpack.c.l.b16 %v127
  %v287 = vunpack.c.h.b16 %v127
  %v288 = vunpack.c.l.b16 %v128
  %v289 = vpack.c.b16 %v196, %v193
  %v290 = vpack.c.b16 %v197, %v194
  %v291 = vpack.c.b16 %v198, %v195
  %v292 = vpack.c.b16 %v202, %v199
  %v293 = vpack.c.b16 %v203, %v200
  %v294 = vpack.c.b16 %v204, %v201
  %v295 = vpack.c.b16 %v208, %v205
  %v296 = vpack.c.b16 %v209, %v206
  %v297 = vpack.c.b16 %v210, %v207
  %v298 = vpack.c.b16 %v214, %v211
  %v299 = vpack.c.b16 %v215, %v212
  %v300 = vpack.c.b16 %v216, %v213
  %v301 = vpack.c.b16 %v220, %v217
  %v302 = vpack.c.b16 %v221, %v218
  %v303 = vpack.c.b16 %v222, %v219
  %v304 = vpack.c.b16 %v226, %v223
  %v305 = vpack.c.b16 %v227, %v224
  %v306 = vpack.c.b16 %v228, %v225
  %v307 = vpack.c.b16 %v232, %v229
  %v308 = vpack.c.b16 %v233, %v230
  %v309 = vpack.c.b16 %v234, %v231
  %v310 = vpack.c.b16 %v238, %v235
  %v311 = vpack.c.b16 %v239, %v236
  %v312 = vpack.c.b16 %v240, %v237
  %v313 = vpack.c.b16 %v244, %v241
  %v314 = vpack.c.b16 %v245, %v242
  %v315 = vpack.c.b16 %v246, %v243
  %v316 = vpack.c.b16 %v250, %v247
  %v317 = vpack.c.b16 %v251, %v248
  %v318 = vpack.c.b16 %v252, %v249
  %v319 = vpack.c.b16 %v256, %v253
  %v320 = vpack.c.b16 %v257, %v254
  %v321 = vpack.c.b16 %v258, %v255
  %v322 = vpack.c.b16 %v262, %v259
  %v323 = vpack.c.b16 %v263, %v260
  %v324 = vpack.c.b16 %v264, %v261
  %v325 = vpack.c.b16 %v268, %v265
  %v326 = vpack.c.b16 %v269, %v266
  %v327 = vpack.c.b16 %v270, %v267
  %v328 = vpack.c.b16 %v274, %v271
  %v329 = vpack.c.b16 %v275, %v272
  %v330 = vpack.c.b16 %v276, %v273
  %v331 = vpack.c.b16 %v280, %v277
  %v332 = vpack.c.b16 %v281, %v278
  %v333 = vpack.c.b16 %v282, %v279
  %v334 = vpack.c.b16 %v286, %v283
  %v335 = vpack.c.b16 %v287, %v284
  %v336 = vpack.c.b16 %v288, %v285
  %v433 = vunpack.c.l.b16 %v17
  %v434 = vunpack.c.l.b16 %v18
  %v435 = vunpack.c.l.b16 %v19
  %v436 = vunpack.c.l.b16 %v20
  %v437 = vunpack.c.l.b16 %v21
  %v438 = vunpack.c.l.b16 %v22
  %v439 = vunpack.c.l.b16 %v23
  %v440 = vunpack.c.l.b16 %v24
  %v441 = vunpack.c.l.b16 %v25
  %v442 = vunpack.c.l.b16 %v26
  %v443 = vunpack.c.l.b16 %v27
  %v444 = vunpack.c.l.b16 %v28
  %v445 = vunpack.c.l.b16 %v29
  %v446 = vunpack.c.l.b16 %v30
  %v447 = vunpack.c.l.b16 %v31
  %v448 = vunpack.c.l.b16 %v32
  %v449 = vunpack.c.l.b16 %v33
  %v450 = vunpack.c.l.b16 %v34
  %v451 = vunpack.c.l.b16 %v35
  %v452 = vunpack.c.l.b16 %v36
  %v453 = vunpack.c.l.b16 %v37
  %v454 = vunpack.c.l.b16 %v38
  %v455 = vunpack.c.l.b16 %v39
  %v456 = vunpack.c.l.b16 %v40
  %v457 = vunpack.c.l.b16 %v41
  %v458 = vunpack.c.l.b16 %v42
  %v459 = vunpack.c.l.b16 %v43
  %v460 = vunpack.c.l.b16 %v44
  %v461 = vunpack.c.l.b16 %v45
  %v462 = vunpack.c.l.b16 %v46
  %v463 = vunpack.c.l.b16 %v47
  %v464 = vunpack.c.l.b16 %v48
  %v465 = vunpack.c.l.b16 %v49
  %v466 = vunpack.c.l.b16 %v50
  %v467 = vunpack.c.l.b16 %v51
  %v468 = vunpack.c.l.b16 %v52
  %v469 = vunpack.c.l.b16 %v53
  %v470 = vunpack.c.l.b16 %v54
  %v471 = vunpack.c.l.b16 %v55
  %v472 = vunpack.c.l.b16 %v56
  %v473 = vunpack.c.l.b16 %v57
  %v474 = vunpack.c.l.b16 %v58
  %v475 = vunpack.c.l.b16 %v59
  %v476 = vunpack.c.l.b16 %v60
  %v477 = vunpack.c.l.b16 %v61
  %v478 = vunpack.c.l.b16 %v62
  %v479 = vunpack.c.l.b16 %v63
  %v480 = vunpack.c.l.b16 %v64
  %v481 = vpack.c.b16 %v434, %v433
  %v482 = vpack.c.b16 %v436, %v435
  %v483 = vpack.c.b16 %v438, %v437
  %v484 = vpack.c.b16 %v440, %v439
  %v485 = vpack.c.b16 %v442, %v441
  %v486 = vpack.c.b16 %v444, %v443
  %v487 = vpack.c.b16 %v446, %v445
  %v488 = vpack.c.b16 %v448, %v447
  %v489 = vpack.c.b16 %v450, %v449
  %v490 = vpack.c.b16 %v452, %v451
  %v491 = vpack.c.b16 %v454, %v453
  %v492 = vpack.c.b16 %v456, %v455
  %v493 = vpack.c.b16 %v458, %v457
  %v494 = vpack.c.b16 %v460, %v459
  %v495 = vpack.c.b16 %v462, %v461
  %v496 = vpack.c.b16 %v464, %v463
  %v497 = vpack.c.b16 %v466, %v465
  %v498 = vpack.c.b16 %v468, %v467
  %v499 = vpack.c.b16 %v470, %v469
  %v500 = vpack.c.b16 %v472, %v471
  %v501 = vpack.c.b16 %v474, %v473
  %v502 = vpack.c.b16 %v476, %v475
  %v503 = vpack.c.b16 %v478, %v477
  %v504 = vpack.c.b16 %v480, %v479
  %529 = vmatprep.subr.bf16.mxu0 0
  %530 = vmatpush1.bf16.msra.mxu0 %v488
  %531 = vmatprep.subr.bf16.mxu0 0
  %532 = vmatpush1.bf16.msra.mxu0 %v487
  %533 = vmatprep.subr.bf16.mxu0 0
  %534 = vmatpush1.bf16.msra.mxu0 %v486
  %535 = vmatprep.subr.bf16.mxu0 0
  %536 = vmatpush1.bf16.msra.mxu0 %v485
  %537 = vmatprep.subr.bf16.mxu0 0
  %538 = vmatpush1.bf16.msra.mxu0 %v484
  %539 = vmatprep.subr.bf16.mxu0 0
  %540 = vmatpush1.bf16.msra.mxu0 %v483
  %541 = vmatprep.subr.bf16.mxu0 0
  %542 = vmatpush1.bf16.msra.mxu0 %v482
  %543 = vmatprep.subr.bf16.mxu0 0
  %544 = vmatpush1.bf16.msra.mxu0 %v481
  %545 = vmatprep.subr.bf16.mxu0 0
  %546 = vmatpush2.bf16.msra.mxu0 %v496
  %547 = vmatprep.subr.bf16.mxu0 0
  %548 = vmatpush2.bf16.msra.mxu0 %v495
  %549 = vmatprep.subr.bf16.mxu0 0
  %550 = vmatpush2.bf16.msra.mxu0 %v494
  %551 = vmatprep.subr.bf16.mxu0 0
  %552 = vmatpush2.bf16.msra.mxu0 %v493
  %553 = vmatprep.subr.bf16.mxu0 0
  %554 = vmatpush2.bf16.msra.mxu0 %v492
  %555 = vmatprep.subr.bf16.mxu0 0
  %556 = vmatpush2.bf16.msra.mxu0 %v491
  %557 = vmatprep.subr.bf16.mxu0 0
  %558 = vmatpush2.bf16.msra.mxu0 %v490
  %559 = vmatprep.subr.bf16.mxu0 0
  %560 = vmatpush2.bf16.msra.mxu0 %v489
  %561 = vmatprep.mubr.bf16.mxu0 %v290
  %562 = vmatmul.mubr.bf16.gmra.mxu0 %v289
  %v563 = vpop.f32.mrf.mxu0
  %v564 = vadd.f32 0.0, %v563
  %v565 = vpop.f32.mrf.mxu0
  %v566 = vpop.f32.mrf.mxu0
  %v567 = vadd.f32 0.0, %v566
  %v568 = vpop.f32.mrf.mxu0
  %569 = vmatprep.mubr.bf16.mxu0 %v293
  %570 = vmatmul.mubr.bf16.gmra.mxu0 %v292
  %v571 = vpop.f32.mrf.mxu0
  %v572 = vadd.f32 0.0, %v571
  %v573 = vpop.f32.mrf.mxu0
  %v574 = vpop.f32.mrf.mxu0
  %v575 = vadd.f32 0.0, %v574
  %v576 = vpop.f32.mrf.mxu0
  %577 = vmatprep.mubr.bf16.mxu0 %v296
  %578 = vmatmul.mubr.bf16.gmra.mxu0 %v295
  %v579 = vpop.f32.mrf.mxu0
  %v580 = vadd.f32 0.0, %v579
  %v581 = vpop.f32.mrf.mxu0
  %v582 = vpop.f32.mrf.mxu0
  %v583 = vadd.f32 0.0, %v582
  %v584 = vpop.f32.mrf.mxu0
  %585 = vmatprep.mubr.bf16.mxu0 %v299
  %586 = vmatmul.mubr.bf16.gmra.mxu0 %v298
  %v587 = vpop.f32.mrf.mxu0
  %v588 = vadd.f32 0.0, %v587
  %v589 = vpop.f32.mrf.mxu0
  %v590 = vpop.f32.mrf.mxu0
  %v591 = vadd.f32 0.0, %v590
  %v592 = vpop.f32.mrf.mxu0
  %593 = vmatprep.mubr.bf16.mxu0 %v302
  %594 = vmatmul.mubr.bf16.gmra.mxu0 %v301
  %v595 = vpop.f32.mrf.mxu0
  %v596 = vadd.f32 0.0, %v595
  %v597 = vpop.f32.mrf.mxu0
  %v598 = vpop.f32.mrf.mxu0
  %v599 = vadd.f32 0.0, %v598
  %v600 = vpop.f32.mrf.mxu0
  %601 = vmatprep.mubr.bf16.mxu0 %v305
  %602 = vmatmul.mubr.bf16.gmra.mxu0 %v304
  %v603 = vpop.f32.mrf.mxu0
  %v604 = vadd.f32 0.0, %v603
  %v605 = vpop.f32.mrf.mxu0
  %v606 = vpop.f32.mrf.mxu0
  %v607 = vadd.f32 0.0, %v606
  %v608 = vpop.f32.mrf.mxu0
  %609 = vmatprep.mubr.bf16.mxu0 %v308
  %610 = vmatmul.mubr.bf16.gmra.mxu0 %v307
  %v611 = vpop.f32.mrf.mxu0
  %v612 = vadd.f32 0.0, %v611
  %v613 = vpop.f32.mrf.mxu0
  %v614 = vpop.f32.mrf.mxu0
  %v615 = vadd.f32 0.0, %v614
  %v616 = vpop.f32.mrf.mxu0
  %617 = vmatprep.mubr.bf16.mxu0 %v311
  %618 = vmatmul.mubr.bf16.gmra.mxu0 %v310
  %v619 = vpop.f32.mrf.mxu0
  %v620 = vadd.f32 0.0, %v619
  %v621 = vpop.f32.mrf.mxu0
  %v622 = vpop.f32.mrf.mxu0
  %v623 = vadd.f32 0.0, %v622
  %v624 = vpop.f32.mrf.mxu0
  %625 = vmatprep.mubr.bf16.mxu0 %v314
  %626 = vmatmul.mubr.bf16.gmra.mxu0 %v313
  %v627 = vpop.f32.mrf.mxu0
  %v628 = vadd.f32 0.0, %v627
  %v629 = vpop.f32.mrf.mxu0
  %v630 = vpop.f32.mrf.mxu0
  %v631 = vadd.f32 0.0, %v630
  %v632 = vpop.f32.mrf.mxu0
  %633 = vmatprep.mubr.bf16.mxu0 %v317
  %634 = vmatmul.mubr.bf16.gmra.mxu0 %v316
  %v635 = vpop.f32.mrf.mxu0
  %v636 = vadd.f32 0.0, %v635
  %v637 = vpop.f32.mrf.mxu0
  %v638 = vpop.f32.mrf.mxu0
  %v639 = vadd.f32 0.0, %v638
  %v640 = vpop.f32.mrf.mxu0
  %641 = vmatprep.mubr.bf16.mxu0 %v320
  %642 = vmatmul.mubr.bf16.gmra.mxu0 %v319
  %v643 = vpop.f32.mrf.mxu0
  %v644 = vadd.f32 0.0, %v643
  %v645 = vpop.f32.mrf.mxu0
  %v646 = vpop.f32.mrf.mxu0
  %v647 = vadd.f32 0.0, %v646
  %v648 = vpop.f32.mrf.mxu0
  %649 = vmatprep.mubr.bf16.mxu0 %v323
  %650 = vmatmul.mubr.bf16.gmra.mxu0 %v322
  %v651 = vpop.f32.mrf.mxu0
  %v652 = vadd.f32 0.0, %v651
  %v653 = vpop.f32.mrf.mxu0
  %v654 = vpop.f32.mrf.mxu0
  %v655 = vadd.f32 0.0, %v654
  %v656 = vpop.f32.mrf.mxu0
  %657 = vmatprep.mubr.bf16.mxu0 %v326
  %658 = vmatmul.mubr.bf16.gmra.mxu0 %v325
  %v659 = vpop.f32.mrf.mxu0
  %v660 = vadd.f32 0.0, %v659
  %v661 = vpop.f32.mrf.mxu0
  %v662 = vpop.f32.mrf.mxu0
  %v663 = vadd.f32 0.0, %v662
  %v664 = vpop.f32.mrf.mxu0
  %665 = vmatprep.mubr.bf16.mxu0 %v329
  %666 = vmatmul.mubr.bf16.gmra.mxu0 %v328
  %v667 = vpop.f32.mrf.mxu0
  %v668 = vadd.f32 0.0, %v667
  %v669 = vpop.f32.mrf.mxu0
  %v670 = vpop.f32.mrf.mxu0
  %v671 = vadd.f32 0.0, %v670
  %v672 = vpop.f32.mrf.mxu0
  %673 = vmatprep.mubr.bf16.mxu0 %v332
  %674 = vmatmul.mubr.bf16.gmra.mxu0 %v331
  %v675 = vpop.f32.mrf.mxu0
  %v676 = vadd.f32 0.0, %v675
  %v677 = vpop.f32.mrf.mxu0
  %v678 = vpop.f32.mrf.mxu0
  %v679 = vadd.f32 0.0, %v678
  %v680 = vpop.f32.mrf.mxu0
  %681 = vmatprep.mubr.bf16.mxu0 %v335
  %682 = vmatmul.mubr.bf16.gmra.mxu0 %v334
  %v683 = vpop.f32.mrf.mxu0
  %v684 = vadd.f32 0.0, %v683
  %v685 = vpop.f32.mrf.mxu0
  %v686 = vpop.f32.mrf.mxu0
  %v687 = vadd.f32 0.0, %v686
  %v688 = vpop.f32.mrf.mxu0
  %689 = vdwg.mxu0
  %690 = vmatprep.subr.bf16.mxu0 0
  %691 = vmatpush1.bf16.msra.mxu0 %v504
  %692 = vmatprep.subr.bf16.mxu0 0
  %693 = vmatpush1.bf16.msra.mxu0 %v503
  %694 = vmatprep.subr.bf16.mxu0 0
  %695 = vmatpush1.bf16.msra.mxu0 %v502
  %696 = vmatprep.subr.bf16.mxu0 0
  %697 = vmatpush1.bf16.msra.mxu0 %v501
  %698 = vmatprep.subr.bf16.mxu0 0
  %699 = vmatpush1.bf16.msra.mxu0 %v500
  %700 = vmatprep.subr.bf16.mxu0 0
  %701 = vmatpush1.bf16.msra.mxu0 %v499
  %702 = vmatprep.subr.bf16.mxu0 0
  %703 = vmatpush1.bf16.msra.mxu0 %v498
  %704 = vmatprep.subr.bf16.mxu0 0
  %705 = vmatpush1.bf16.msra.mxu0 %v497
  %706 = vmatprep.subr.bf16.mxu0 0
  %707 = vmatpush2.bf16.msra.mxu0 0
  %708 = vmatprep.subr.bf16.mxu0 0
  %709 = vmatpush2.bf16.msra.mxu0 0
  %710 = vmatprep.subr.bf16.mxu0 0
  %711 = vmatpush2.bf16.msra.mxu0 0
  %712 = vmatprep.subr.bf16.mxu0 0
  %713 = vmatpush2.bf16.msra.mxu0 0
  %714 = vmatprep.subr.bf16.mxu0 0
  %715 = vmatpush2.bf16.msra.mxu0 0
  %716 = vmatprep.subr.bf16.mxu0 0
  %717 = vmatpush2.bf16.msra.mxu0 0
  %718 = vmatprep.subr.bf16.mxu0 0
  %719 = vmatpush2.bf16.msra.mxu0 0
  %720 = vmatprep.subr.bf16.mxu0 0
  %721 = vmatpush2.bf16.msra.mxu0 0
  %722 = vmatprep.mubr.bf16.mxu0 0
  %723 = vmatmul.mubr.bf16.gmra.mxu0 %v291
  %v724 = vpop.f32.mrf.mxu0
  %v725 = vadd.f32 %v564, %v724
  %v726 = vpop.f32.mrf.mxu0
  %v727 = vpop.f32.mrf.mxu0
  %v728 = vadd.f32 %v567, %v727
  %v729 = vpop.f32.mrf.mxu0
  %730 = vmatprep.mubr.bf16.mxu0 0
  %731 = vmatmul.mubr.bf16.gmra.mxu0 %v294
  %v732 = vpop.f32.mrf.mxu0
  %v733 = vadd.f32 %v572, %v732
  %v734 = vpop.f32.mrf.mxu0
  %v735 = vpop.f32.mrf.mxu0
  %v736 = vadd.f32 %v575, %v735
  %v737 = vpop.f32.mrf.mxu0
  %738 = vmatprep.mubr.bf16.mxu0 0
  %739 = vmatmul.mubr.bf16.gmra.mxu0 %v297
  %v740 = vpop.f32.mrf.mxu0
  %v741 = vadd.f32 %v580, %v740
  %v742 = vpop.f32.mrf.mxu0
  %v743 = vpop.f32.mrf.mxu0
  %v744 = vadd.f32 %v583, %v743
  %v745 = vpop.f32.mrf.mxu0
  %746 = vmatprep.mubr.bf16.mxu0 0
  %747 = vmatmul.mubr.bf16.gmra.mxu0 %v300
  %v748 = vpop.f32.mrf.mxu0
  %v749 = vadd.f32 %v588, %v748
  %v750 = vpop.f32.mrf.mxu0
  %v751 = vpop.f32.mrf.mxu0
  %v752 = vadd.f32 %v591, %v751
  %v753 = vpop.f32.mrf.mxu0
  %754 = vmatprep.mubr.bf16.mxu0 0
  %755 = vmatmul.mubr.bf16.gmra.mxu0 %v303
  %v756 = vpop.f32.mrf.mxu0
  %v757 = vadd.f32 %v596, %v756
  %v758 = vpop.f32.mrf.mxu0
  %v759 = vpop.f32.mrf.mxu0
  %v760 = vadd.f32 %v599, %v759
  %v761 = vpop.f32.mrf.mxu0
  %762 = vmatprep.mubr.bf16.mxu0 0
  %763 = vmatmul.mubr.bf16.gmra.mxu0 %v306
  %v764 = vpop.f32.mrf.mxu0
  %v765 = vadd.f32 %v604, %v764
  %v766 = vpop.f32.mrf.mxu0
  %v767 = vpop.f32.mrf.mxu0
  %v768 = vadd.f32 %v607, %v767
  %v769 = vpop.f32.mrf.mxu0
  %770 = vmatprep.mubr.bf16.mxu0 0
  %771 = vmatmul.mubr.bf16.gmra.mxu0 %v309
  %v772 = vpop.f32.mrf.mxu0
  %v773 = vadd.f32 %v612, %v772
  %v774 = vpop.f32.mrf.mxu0
  %v775 = vpop.f32.mrf.mxu0
  %v776 = vadd.f32 %v615, %v775
  %v777 = vpop.f32.mrf.mxu0
  %778 = vmatprep.mubr.bf16.mxu0 0
  %779 = vmatmul.mubr.bf16.gmra.mxu0 %v312
  %v780 = vpop.f32.mrf.mxu0
  %v781 = vadd.f32 %v620, %v780
  %v782 = vpop.f32.mrf.mxu0
  %v783 = vpop.f32.mrf.mxu0
  %v784 = vadd.f32 %v623, %v783
  %v785 = vpop.f32.mrf.mxu0
  %786 = vmatprep.mubr.bf16.mxu0 0
  %787 = vmatmul.mubr.bf16.gmra.mxu0 %v315
  %v788 = vpop.f32.mrf.mxu0
  %v789 = vadd.f32 %v628, %v788
  %v790 = vpop.f32.mrf.mxu0
  %v791 = vpop.f32.mrf.mxu0
  %v792 = vadd.f32 %v631, %v791
  %v793 = vpop.f32.mrf.mxu0
  %794 = vmatprep.mubr.bf16.mxu0 0
  %795 = vmatmul.mubr.bf16.gmra.mxu0 %v318
  %v796 = vpop.f32.mrf.mxu0
  %v797 = vadd.f32 %v636, %v796
  %v798 = vpop.f32.mrf.mxu0
  %v799 = vpop.f32.mrf.mxu0
  %v800 = vadd.f32 %v639, %v799
  %v801 = vpop.f32.mrf.mxu0
  %802 = vmatprep.mubr.bf16.mxu0 0
  %803 = vmatmul.mubr.bf16.gmra.mxu0 %v321
  %v804 = vpop.f32.mrf.mxu0
  %v805 = vadd.f32 %v644, %v804
  %v806 = vpop.f32.mrf.mxu0
  %v807 = vpop.f32.mrf.mxu0
  %v808 = vadd.f32 %v647, %v807
  %v809 = vpop.f32.mrf.mxu0
  %810 = vmatprep.mubr.bf16.mxu0 0
  %811 = vmatmul.mubr.bf16.gmra.mxu0 %v324
  %v812 = vpop.f32.mrf.mxu0
  %v813 = vadd.f32 %v652, %v812
  %v814 = vpop.f32.mrf.mxu0
  %v815 = vpop.f32.mrf.mxu0
  %v816 = vadd.f32 %v655, %v815
  %v817 = vpop.f32.mrf.mxu0
  %818 = vmatprep.mubr.bf16.mxu0 0
  %819 = vmatmul.mubr.bf16.gmra.mxu0 %v327
  %v820 = vpop.f32.mrf.mxu0
  %v821 = vadd.f32 %v660, %v820
  %v822 = vpop.f32.mrf.mxu0
  %v823 = vpop.f32.mrf.mxu0
  %v824 = vadd.f32 %v663, %v823
  %v825 = vpop.f32.mrf.mxu0
  %826 = vmatprep.mubr.bf16.mxu0 0
  %827 = vmatmul.mubr.bf16.gmra.mxu0 %v330
  %v828 = vpop.f32.mrf.mxu0
  %v829 = vadd.f32 %v668, %v828
  %v830 = vpop.f32.mrf.mxu0
  %v831 = vpop.f32.mrf.mxu0
  %v832 = vadd.f32 %v671, %v831
  %v833 = vpop.f32.mrf.mxu0
  %834 = vmatprep.mubr.bf16.mxu0 0
  %835 = vmatmul.mubr.bf16.gmra.mxu0 %v333
  %v836 = vpop.f32.mrf.mxu0
  %v837 = vadd.f32 %v676, %v836
  %v838 = vpop.f32.mrf.mxu0
  %v839 = vpop.f32.mrf.mxu0
  %v840 = vadd.f32 %v679, %v839
  %v841 = vpop.f32.mrf.mxu0
  %842 = vmatprep.mubr.bf16.mxu0 0
  %843 = vmatmul.mubr.bf16.gmra.mxu0 %v336
  %v844 = vpop.f32.mrf.mxu0
  %v845 = vadd.f32 %v684, %v844
  %v846 = vpop.f32.mrf.mxu0
  %v847 = vpop.f32.mrf.mxu0
  %v848 = vadd.f32 %v687, %v847
  %v849 = vpop.f32.mrf.mxu0
  %850 = vdwg.mxu0
  %p851 = scmp.eq.s32.totalorder 0, 0
  // Predicated region
  $region10: #{_lambda_.7} parent=0 // pred_check
    %p852 = pneg %p851
  $region11: #{_lambda_.7} parent=0 // pred_check_branch
    %854 = sbr.rel (%p852) target = $region13
  $region12: #{_lambda_.7} parent=0 // pred_region
    %855 = vst [vmem:[%s2] sm:$0xff] %v725
    %856 = vst [vmem:[%s2 + $0x8] sm:$0xff] %v728
    %857 = vst [vmem:[%s2 + $0x10] sm:$0xff] %v733
    %858 = vst [vmem:[%s2 + $0x18] sm:$0xff] %v736
    %859 = vst [vmem:[%s2 + $0x20] sm:$0xff] %v741
    %860 = vst [vmem:[%s2 + $0x28] sm:$0xff] %v744
    %861 = vst [vmem:[%s2 + $0x30] sm:$0xff] %v749
    %862 = vst [vmem:[%s2 + $0x38] sm:$0xff] %v752
    %863 = vst [vmem:[%s2 + $0x40] sm:$0xff] %v757
    %864 = vst [vmem:[%s2 + $0x48] sm:$0xff] %v760
    %865 = vst [vmem:[%s2 + $0x50] sm:$0xff] %v765
    %866 = vst [vmem:[%s2 + $0x58] sm:$0xff] %v768
    %867 = vst [vmem:[%s2 + $0x60] sm:$0xff] %v773
    %868 = vst [vmem:[%s2 + $0x68] sm:$0xff] %v776
    %869 = vst [vmem:[%s2 + $0x70] sm:$0xff] %v781
    %870 = vst [vmem:[%s2 + $0x78] sm:$0xff] %v784
    %871 = vst [vmem:[%s2 + $0x80] sm:$0xff] %v789
    %872 = vst [vmem:[%s2 + $0x88] sm:$0xff] %v792
    %873 = vst [vmem:[%s2 + $0x90] sm:$0xff] %v797
    %874 = vst [vmem:[%s2 + $0x98] sm:$0xff] %v800
    %875 = vst [vmem:[%s2 + $0xa0] sm:$0xff] %v805
    %876 = vst [vmem:[%s2 + $0xa8] sm:$0xff] %v808
    %877 = vst [vmem:[%s2 + $0xb0] sm:$0xff] %v813
    %878 = vst [vmem:[%s2 + $0xb8] sm:$0xff] %v816
    %879 = vst [vmem:[%s2 + $0xc0] sm:$0xff] %v821
    %880 = vst [vmem:[%s2 + $0xc8] sm:$0xff] %v824
    %881 = vst [vmem:[%s2 + $0xd0] sm:$0xff] %v829
    %882 = vst [vmem:[%s2 + $0xd8] sm:$0xff] %v832
    %883 = vst [vmem:[%s2 + $0xe0] sm:$0xff] %v837
    %884 = vst [vmem:[%s2 + $0xe8] sm:$0xff] %v840
    %885 = vst [vmem:[%s2 + $0xf0] sm:$0xff] %v845
    %886 = vst [vmem:[%s2 + $0xf8] sm:$0xff] %v848
  $region13: #{_lambda_.7} parent=0 // pred_fallthru
    _
  %p887 = scmp.gt.s32.totalorder 0, 0
  // Predicated region
  $region14: #{_lambda_.7} parent=0 // pred_check
    %p888 = pneg %p887
  $region15: #{_lambda_.7} parent=0 // pred_check_branch
    %890 = sbr.rel (%p888) target = $region17
  $region16: #{_lambda_.7} parent=0 // pred_region
    %v891 = vld [vmem:[%s2] sm:$0xff]
    %v892 = vld [vmem:[%s2 + $0x8] sm:$0xff]
    %v893 = vld [vmem:[%s2 + $0x10] sm:$0xff]
    %v894 = vld [vmem:[%s2 + $0x18] sm:$0xff]
    %v895 = vld [vmem:[%s2 + $0x20] sm:$0xff]
    %v896 = vld [vmem:[%s2 + $0x28] sm:$0xff]
    %v897 = vld [vmem:[%s2 + $0x30] sm:$0xff]
    %v898 = vld [vmem:[%s2 + $0x38] sm:$0xff]
    %v899 = vld [vmem:[%s2 + $0x40] sm:$0xff]
    %v900 = vld [vmem:[%s2 + $0x48] sm:$0xff]
    %v901 = vld [vmem:[%s2 + $0x50] sm:$0xff]
    %v902 = vld [vmem:[%s2 + $0x58] sm:$0xff]
    %v903 = vld [vmem:[%s2 + $0x60] sm:$0xff]
    %v904 = vld [vmem:[%s2 + $0x68] sm:$0xff]
    %v905 = vld [vmem:[%s2 + $0x70] sm:$0xff]
    %v906 = vld [vmem:[%s2 + $0x78] sm:$0xff]
    %v907 = vld [vmem:[%s2 + $0x80] sm:$0xff]
    %v908 = vld [vmem:[%s2 + $0x88] sm:$0xff]
    %v909 = vld [vmem:[%s2 + $0x90] sm:$0xff]
    %v910 = vld [vmem:[%s2 + $0x98] sm:$0xff]
    %v911 = vld [vmem:[%s2 + $0xa0] sm:$0xff]
    %v912 = vld [vmem:[%s2 + $0xa8] sm:$0xff]
    %v913 = vld [vmem:[%s2 + $0xb0] sm:$0xff]
    %v914 = vld [vmem:[%s2 + $0xb8] sm:$0xff]
    %v915 = vld [vmem:[%s2 + $0xc0] sm:$0xff]
    %v916 = vld [vmem:[%s2 + $0xc8] sm:$0xff]
    %v917 = vld [vmem:[%s2 + $0xd0] sm:$0xff]
    %v918 = vld [vmem:[%s2 + $0xd8] sm:$0xff]
    %v919 = vld [vmem:[%s2 + $0xe0] sm:$0xff]
    %v920 = vld [vmem:[%s2 + $0xe8] sm:$0xff]
    %v921 = vld [vmem:[%s2 + $0xf0] sm:$0xff]
    %v922 = vld [vmem:[%s2 + $0xf8] sm:$0xff]
    %v923 = vadd.f32 %v891, %v725
    %v924 = vadd.f32 %v892, %v728
    %v925 = vadd.f32 %v893, %v733
    %v926 = vadd.f32 %v894, %v736
    %v927 = vadd.f32 %v895, %v741
    %v928 = vadd.f32 %v896, %v744
    %v929 = vadd.f32 %v897, %v749
    %v930 = vadd.f32 %v898, %v752
    %v931 = vadd.f32 %v899, %v757
    %v932 = vadd.f32 %v900, %v760
    %v933 = vadd.f32 %v901, %v765
    %v934 = vadd.f32 %v902, %v768
    %v935 = vadd.f32 %v903, %v773
    %v936 = vadd.f32 %v904, %v776
    %v937 = vadd.f32 %v905, %v781
    %v938 = vadd.f32 %v906, %v784
    %v939 = vadd.f32 %v907, %v789
    %v940 = vadd.f32 %v908, %v792
    %v941 = vadd.f32 %v909, %v797
    %v942 = vadd.f32 %v910, %v800
    %v943 = vadd.f32 %v911, %v805
    %v944 = vadd.f32 %v912, %v808
    %v945 = vadd.f32 %v913, %v813
    %v946 = vadd.f32 %v914, %v816
    %v947 = vadd.f32 %v915, %v821
    %v948 = vadd.f32 %v916, %v824
    %v949 = vadd.f32 %v917, %v829
    %v950 = vadd.f32 %v918, %v832
    %v951 = vadd.f32 %v919, %v837
    %v952 = vadd.f32 %v920, %v840
    %v953 = vadd.f32 %v921, %v845
    %v954 = vadd.f32 %v922, %v848
    %955 = vst [vmem:[%s2] sm:$0xff] %v923
    %956 = vst [vmem:[%s2 + $0x8] sm:$0xff] %v924
    %957 = vst [vmem:[%s2 + $0x10] sm:$0xff] %v925
    %958 = vst [vmem:[%s2 + $0x18] sm:$0xff] %v926
    %959 = vst [vmem:[%s2 + $0x20] sm:$0xff] %v927
    %960 = vst [vmem:[%s2 + $0x28] sm:$0xff] %v928
    %961 = vst [vmem:[%s2 + $0x30] sm:$0xff] %v929
    %962 = vst [vmem:[%s2 + $0x38] sm:$0xff] %v930
    %963 = vst [vmem:[%s2 + $0x40] sm:$0xff] %v931
    %964 = vst [vmem:[%s2 + $0x48] sm:$0xff] %v932
    %965 = vst [vmem:[%s2 + $0x50] sm:$0xff] %v933
    %966 = vst [vmem:[%s2 + $0x58] sm:$0xff] %v934
    %967 = vst [vmem:[%s2 + $0x60] sm:$0xff] %v935
    %968 = vst [vmem:[%s2 + $0x68] sm:$0xff] %v936
    %969 = vst [vmem:[%s2 + $0x70] sm:$0xff] %v937
    %970 = vst [vmem:[%s2 + $0x78] sm:$0xff] %v938
    %971 = vst [vmem:[%s2 + $0x80] sm:$0xff] %v939
    %972 = vst [vmem:[%s2 + $0x88] sm:$0xff] %v940
    %973 = vst [vmem:[%s2 + $0x90] sm:$0xff] %v941
    %974 = vst [vmem:[%s2 + $0x98] sm:$0xff] %v942
    %975 = vst [vmem:[%s2 + $0xa0] sm:$0xff] %v943
    %976 = vst [vmem:[%s2 + $0xa8] sm:$0xff] %v944
    %977 = vst [vmem:[%s2 + $0xb0] sm:$0xff] %v945
    %978 = vst [vmem:[%s2 + $0xb8] sm:$0xff] %v946
    %979 = vst [vmem:[%s2 + $0xc0] sm:$0xff] %v947
    %980 = vst [vmem:[%s2 + $0xc8] sm:$0xff] %v948
    %981 = vst [vmem:[%s2 + $0xd0] sm:$0xff] %v949
    %982 = vst [vmem:[%s2 + $0xd8] sm:$0xff] %v950
    %983 = vst [vmem:[%s2 + $0xe0] sm:$0xff] %v951
    %984 = vst [vmem:[%s2 + $0xe8] sm:$0xff] %v952
    %985 = vst [vmem:[%s2 + $0xf0] sm:$0xff] %v953
    %986 = vst [vmem:[%s2 + $0xf8] sm:$0xff] %v954
  $region17: #{_lambda_.7} parent=0 // pred_fallthru
    _
  // Predicated region
  $region18: #{_lambda_.7} parent=0 // pred_check
    _
  $region19: #{_lambda_.7} parent=0 // pred_check_branch
    %988 = sbr.rel (0) target = $region21
  $region20: #{_lambda_.7} parent=0 // pred_region
    _
  $region21: #{_lambda_.7} parent=0 // pred_fallthru
    _
  // Predicated region
  $region22: #{_lambda_.7} parent=0 // pred_check
    _
  $region23: #{_lambda_.7} parent=0 // pred_check_branch
    %990 = sbr.rel (0) target = $region25
  $region24: #{_lambda_.7} parent=0 // pred_region
    _
  $region25: #{_lambda_.7} parent=0 // pred_fallthru
    _

</llo_original>
